<compile_context>
chip_gen: v6e
topology: v6e:2x2x1
jax: 0.10.0
libtpu: 0.0.40
codegen_flags: <defaults>
</compile_context>

<pallas_src>
import math

import jax
import jax.numpy as jnp
from jax.experimental import pallas as pl
from jax.experimental.pallas import tpu as pltpu

# ----- static dimensions of the Net -----
IMG = 28                    # input spatial size
KS = 5                      # conv kernel size
C1, C2 = 10, 20             # conv output channels
OH1 = IMG - KS + 1          # 24  conv1 output spatial
PH1 = OH1 // 2              # 12  after pool1
OH2 = PH1 - KS + 1          # 8   conv2 output spatial
PH2 = OH2 // 2              # 4   after pool2
FC1_OUT, FC2_OUT = 50, 10
NPAD = 128                  # lane-dense padding for fc hidden / logits
BT_MAX = 128                # max batch tile

HALF1 = PH1 * C1            # 120  conv1 columns per dj half (q, oc1)
HALF1P = 128                # padded to a full vreg lane width
HALF2 = PH2 * C2            # 80   conv2 columns per dj2 half (q2, oc2)
HALF2P = 128
COLS1P = 2 * HALF1P         # 256  conv1 matmul columns, ordered (dj, q, oc1) padded
COLS2P = 2 * HALF2P         # 256  conv2 matmul columns, ordered (dj2, q2, oc2) padded
K1 = KS * IMG               # 140  conv1 fused contraction (kh, w)
K2 = KS * HALF1P            # 640  conv2 fused contraction (kh2, q*10+ic padded)


# ------------------------------ fused kernel --------------------------------

def _net_kernel(x_ref, t1_ref, b1_ref, t2_ref, b2_ref, wf1_ref, fb1_ref,
                wf2_ref, fb2_ref, out_ref, scr1, scr2):
    f32 = jnp.float32
    bf16 = jnp.bfloat16
    bt = x_ref.shape[0]

    # input arrives bf16 (halved DMA); upcast once so all slicing / reshaping
    # below stays on f32 (8,128)-tile-aligned layouts.
    x = x_ref[...].astype(f32)                                   # [bt, 28, 28]

    # ---- conv1 as ONE fused Toeplitz matmul: rows=(b,i), K=(kh,w)=140,
    #      cols=(dj, q, oc1) padded to 2*128 ----
    lhs1 = jnp.concatenate([x[:, kh:kh + OH1, :] for kh in range(KS)],
                           axis=-1).reshape(bt * OH1, K1)        # [bt*24, 140]
    acc1 = jnp.dot(lhs1.astype(bf16), t1_ref[...],
                   preferred_element_type=f32)                   # [bt*24, 256]

    # 2x2 max pool: width (dj) via 128-lane halves (pure VPU), height (di) via
    # stride-2 sublane reads of the VMEM scratch.  bias/relu after the max
    # (max-pool commutes with +bias and relu).
    mj1 = jnp.maximum(acc1[:, :HALF1P], acc1[:, HALF1P:])        # [bt*24, 128]
    scr1[...] = mj1.reshape(bt, OH1, HALF1P)                     # [bt, 24, 128]
    mi1 = jnp.maximum(scr1[:, pl.ds(0, PH1, 2), :],
                      scr1[:, pl.ds(1, PH1, 2), :])              # [bt, 12, 128]
    a1 = jnp.maximum(mi1 + b1_ref[...], 0.0)                     # rows=(b,p), lanes=(q,oc1)

    # ---- conv2, same structure: rows=(b,i2), K=(kh2, r)=640, cols=(dj2,q2,oc2) ----
    lhs2 = jnp.concatenate([a1[:, kh:kh + OH2, :] for kh in range(KS)],
                           axis=-1).reshape(bt * OH2, K2)        # [bt*8, 640]
    acc2 = jnp.dot(lhs2.astype(bf16), t2_ref[...],
                   preferred_element_type=f32)                   # [bt*8, 256]
    mj2 = jnp.maximum(acc2[:, :HALF2P], acc2[:, HALF2P:])        # [bt*8, 128]
    scr2[...] = mj2.reshape(bt, OH2, HALF2P)                     # [bt, 8, 128]
    mi2 = jnp.maximum(scr2[:, pl.ds(0, PH2, 2), :],
                      scr2[:, pl.ds(1, PH2, 2), :])              # [bt, 4, 128]
    a2 = jnp.maximum(mi2 + b2_ref[...], 0.0)                     # rows=(b,p2), lanes=(q2,oc2)
    # TODO(synk): Dropout2d / F.dropout implemented as identity (eval-mode semantics).

    # ---- fc1 (+relu): torch flatten order folded into the permuted weight; the
    #      512-contraction split over the 4 pooled rows p2 (K=128 each, disjoint
    #      slices so each element is cast to bf16 exactly once) ----
    h = jnp.zeros((bt, NPAD), f32)
    for p2 in range(PH2):
        h = h + jnp.dot(a2[:, p2, :].astype(bf16), wf1_ref[p2],
                        preferred_element_type=f32)
    h = jnp.maximum(h + fb1_ref[...], 0.0)                       # [bt, 128] (lanes>=50 are 0)

    # ---- fc2 + log_softmax (padded logit lanes biased to -1e30 via the bias) ----
    logits = jnp.dot(h.astype(bf16), wf2_ref[...],
                     preferred_element_type=f32) + fb2_ref[...]
    m = jnp.max(logits, axis=-1, keepdims=True)
    s = logits - m
    lse = jnp.log(jnp.sum(jnp.exp(s), axis=-1, keepdims=True))
    out_ref[...] = (s - lse).astype(out_ref.dtype)


def _const_spec(shape):
    n = len(shape)
    return pl.BlockSpec(shape, lambda b, _n=n: (0,) * _n)


def _pick_bt(batch):
    """Batch tile: fill the MXU for big batches, keep >=2 grid steps when the batch
    allows (v7x megacore), and avoid gratuitous padding for tiny batches."""
    bpad8 = -(-batch // 8) * 8
    if bpad8 >= 2 * BT_MAX:
        return BT_MAX
    if bpad8 >= 16:
        return min(BT_MAX, ((bpad8 // 2 + 7) // 8) * 8)
    return 8


def _forward_padded(x_pad, prep, bt):
    bpad = x_pad.shape[0]
    grid = (bpad // bt,)
    in_specs = [
        pl.BlockSpec((bt, IMG, IMG), lambda b: (b, 0, 0)),   # input tile (bf16)
        _const_spec((K1, COLS1P)),                           # T1  [140, 256]
        _const_spec((1, HALF1P)),                            # conv1 bias (tiled+padded)
        _const_spec((K2, COLS2P)),                           # T2  [640, 256]
        _const_spec((1, HALF2P)),                            # conv2 bias (tiled+padded)
        _const_spec((PH2, HALF2P, NPAD)),                    # fc1 weight (split by p2)
        _const_spec((1, NPAD)),                              # fc1 bias (padded)
        _const_spec((NPAD, NPAD)),                           # fc2 weight (padded)
        _const_spec((1, NPAD)),                              # fc2 bias (pad lanes=-1e30)
    ]
    return pl.pallas_call(
        _net_kernel,
        out_shape=jax.ShapeDtypeStruct((bpad, NPAD), jnp.float32),
        grid_spec=pltpu.PrefetchScalarGridSpec(
            num_scalar_prefetch=0,
            grid=grid,
            in_specs=in_specs,
            out_specs=pl.BlockSpec((bt, NPAD), lambda b: (b, 0)),
            scratch_shapes=[
                pltpu.VMEM((bt, OH1, HALF1P), jnp.float32),
                pltpu.VMEM((bt, OH2, HALF2P), jnp.float32),
            ],
        ),
        compiler_params=pltpu.CompilerParams(
            dimension_semantics=("parallel",),
            vmem_limit_bytes=128 * 1024 * 1024,
        ),
    )(x_pad, prep["T1"], prep["b1"], prep["T2"], prep["b2"],
      prep["Wfc1"], prep["fb1"], prep["Wfc2"], prep["fb2"])


# ------------------------- one-time weight preparation ----------------------

def prepare_params(params):
    f32 = jnp.float32
    bf16 = jnp.bfloat16
    w1 = params["w1"].astype(f32)        # [10, 1, 5, 5]
    b1 = params["b1"].astype(f32)
    w2 = params["w2"].astype(f32)        # [20, 10, 5, 5]
    b2 = params["b2"].astype(f32)
    fw1 = params["fc1_w"].astype(f32)    # [50, 320]
    fb1 = params["fc1_b"].astype(f32)
    fw2 = params["fc2_w"].astype(f32)    # [10, 50]
    fb2 = params["fc2_b"].astype(f32)

    # T1[(kh, w), dj*128 + q*10 + oc] = w1[oc, 0, kh, w - (2q+dj)]  (0 <= kw < 5)
    w1s = w1[:, 0]
    kh = jnp.arange(KS)[:, None, None, None, None]
    w = jnp.arange(IMG)[None, :, None, None, None]
    dj = jnp.arange(2)[None, None, :, None, None]
    q = jnp.arange(PH1)[None, None, None, :, None]
    oc = jnp.arange(C1)[None, None, None, None, :]
    kw = w - 2 * q - dj
    valid = (kw >= 0) & (kw < KS)
    T1 = jnp.where(valid, w1s[oc, kh, jnp.clip(kw, 0, KS - 1)], 0.0)
    T1 = T1.reshape(KS, IMG, 2, HALF1)
    T1 = jnp.pad(T1, ((0, 0), (0, 0), (0, 0), (0, HALF1P - HALF1)))
    T1 = T1.reshape(K1, COLS1P)                                  # [140, 256]

    # T2[(kh2, q*10+ic), dj2*128 + q2*20 + oc2] = w2[oc2, ic, kh2, q - (2q2+dj2)]
    kh2 = jnp.arange(KS)[:, None, None, None, None, None]
    qq = jnp.arange(PH1)[None, :, None, None, None, None]
    ic = jnp.arange(C1)[None, None, :, None, None, None]
    dj2 = jnp.arange(2)[None, None, None, :, None, None]
    q2 = jnp.arange(PH2)[None, None, None, None, :, None]
    oc2 = jnp.arange(C2)[None, None, None, None, None, :]
    kw2 = qq - 2 * q2 - dj2
    valid2 = (kw2 >= 0) & (kw2 < KS)
    T2 = jnp.where(valid2, w2[oc2, ic, kh2, jnp.clip(kw2, 0, KS - 1)], 0.0)
    T2 = T2.reshape(KS, HALF1, 2, HALF2)
    T2 = jnp.pad(T2, ((0, 0), (0, HALF1P - HALF1), (0, 0), (0, HALF2P - HALF2)))
    T2 = T2.reshape(K2, COLS2P)                                  # [640, 256]

    # fc1 weight, rows permuted to the kernel's (p2, q2, oc2) element order,
    # matching torch's x.view(-1, 320) flatten index oc2*16 + p2*4 + q2.
    wf = fw1.reshape(FC1_OUT, C2, PH2, PH2)        # [n, oc2, p2, q2]
    wf = jnp.transpose(wf, (2, 3, 1, 0))           # [p2, q2, oc2, n]
    wf = wf.reshape(PH2, HALF2, FC1_OUT)           # row = q2*20 + oc2
    Wfc1 = jnp.pad(wf, ((0, 0), (0, HALF2P - HALF2), (0, NPAD - FC1_OUT)))

    Wfc2 = jnp.zeros((NPAD, NPAD), f32).at[:FC1_OUT, :FC2_OUT].set(fw2.T)

    return dict(
        T1=T1.astype(bf16),
        T2=T2.astype(bf16),
        Wfc1=Wfc1.astype(bf16),
        Wfc2=Wfc2.astype(bf16),
        b1=jnp.pad(jnp.tile(b1, PH1), (0, HALF1P - HALF1)).reshape(1, HALF1P),
        b2=jnp.pad(jnp.tile(b2, PH2), (0, HALF2P - HALF2)).reshape(1, HALF2P),
        fb1=jnp.pad(fb1, (0, NPAD - FC1_OUT)).reshape(1, NPAD),
        fb2=jnp.concatenate(
            [fb2, jnp.full((NPAD - FC2_OUT,), -1e30, f32)]).reshape(1, NPAD),
    )


@jax.jit
def net_forward(prep, x_nchw):
    b = x_nchw.shape[0]
    x = x_nchw[:, 0].astype(jnp.bfloat16)                # [B, 28, 28] bf16 (lane-light DMA)
    bt = _pick_bt(b)
    bpad = -(-b // bt) * bt
    if bpad != b:
        x = jnp.pad(x, ((0, bpad - b), (0, 0), (0, 0)))
    out = _forward_padded(x, prep, bt)
    return out[:b, :FC2_OUT]


# ------------------------------ init & reference ----------------------------

def init_params(key):
    """Deterministic PyTorch-style uniform(-1/sqrt(fan_in), 1/sqrt(fan_in)) init."""
    def uni(k, shape, fan_in):
        bound = 1.0 / math.sqrt(fan_in)
        return jax.random.uniform(k, shape, jnp.float32, -bound, bound)
    ks = jax.random.split(key, 8)
    return {
        "w1": uni(ks[0], (C1, 1, KS, KS), 1 * KS * KS),
        "b1": uni(ks[1], (C1,), 1 * KS * KS),
        "w2": uni(ks[2], (C2, C1, KS, KS), C1 * KS * KS),
        "b2": uni(ks[3], (C2,), C1 * KS * KS),
        "fc1_w": uni(ks[4], (FC1_OUT, 320), 320),
        "fc1_b": uni(ks[5], (FC1_OUT,), 320),
        "fc2_w": uni(ks[6], (FC2_OUT, FC1_OUT), FC1_OUT),
        "fc2_b": uni(ks[7], (FC2_OUT,), FC1_OUT),
    }


def net_reference(params, x_nchw):
    """Plain-JAX (XLA) reference of the PyTorch forward (eval-mode dropout)."""
    def conv(x, w, b):
        y = jax.lax.conv_general_dilated(
            x, w, window_strides=(1, 1), padding="VALID",
            dimension_numbers=("NCHW", "OIHW", "NCHW"))
        return y + b[None, :, None, None]

    def pool_relu(x):
        y = jax.lax.reduce_window(x, -jnp.inf, jax.lax.max,
                                  (1, 1, 2, 2), (1, 1, 2, 2), "VALID")
        return jnp.maximum(y, 0.0)

    x = x_nchw.astype(jnp.float32)
    x = pool_relu(conv(x, params["w1"], params["b1"]))
    x = pool_relu(conv(x, params["w2"], params["b2"]))
    x = x.reshape(x.shape[0], 320)
    x = jnp.maximum(x @ params["fc1_w"].T + params["fc1_b"], 0.0)
    logits = x @ params["fc2_w"].T + params["fc2_b"]
    return jax.nn.log_softmax(logits, axis=-1)


if __name__ == "__main__":
    key = jax.random.PRNGKey(0)
    pkey, xkey = jax.random.split(key)
    params = init_params(pkey)
    prep = prepare_params(params)

    # --- small batch (spec-style input) ---
    x_small = jax.random.normal(xkey, (2, 1, 28, 28), jnp.float32)   # NCHW like PyTorch
    out_small = net_forward(prep, x_small)
    jax.block_until_ready(out_small)
    assert out_small.shape == (2, FC2_OUT)
    # rows of log_softmax must exp-sum to 1
    assert jnp.allclose(jnp.sum(jnp.exp(out_small), axis=-1), 1.0, atol=1e-3)
    ref_small = net_reference(params, x_small)
    err_small = float(jnp.max(jnp.abs(out_small - ref_small)))
    assert err_small < 5e-2, f"small-batch mismatch vs reference: {err_small}"

    # --- larger batch exercises the 128-wide batch tile and the 2-step parallel grid ---
    x_big = jax.random.normal(jax.random.PRNGKey(1), (256, 1, 28, 28), jnp.float32)
    out_big = net_forward(prep, x_big)
    jax.block_until_ready(out_big)
    assert out_big.shape == (256, FC2_OUT)
    ref_big = net_reference(params, x_big)
    err_big = float(jnp.max(jnp.abs(out_big - ref_big)))
    assert err_big < 1e-1, f"big-batch mismatch vs reference: {err_big}"

    print("KERNEL_OK")
</pallas_src>

<mosaic_0001>
module attributes {stable_mosaic.version = 11 : i64} {
  func.func @_net_kernel(%arg0: i32, %arg1: memref<8x28x28xbf16, #tpu.memory_space<vmem>>, %arg2: memref<140x256xbf16, #tpu.memory_space<vmem>>, %arg3: memref<1x128xf32, #tpu.memory_space<vmem>>, %arg4: memref<640x256xbf16, #tpu.memory_space<vmem>>, %arg5: memref<1x128xf32, #tpu.memory_space<vmem>>, %arg6: memref<4x128x128xbf16, #tpu.memory_space<vmem>>, %arg7: memref<1x128xf32, #tpu.memory_space<vmem>>, %arg8: memref<128x128xbf16, #tpu.memory_space<vmem>>, %arg9: memref<1x128xf32, #tpu.memory_space<vmem>>, %arg10: memref<8x128xf32, #tpu.memory_space<vmem>>, %arg11: memref<8x24x128xf32, #tpu.memory_space<vmem>>, %arg12: memref<8x8x128xf32, #tpu.memory_space<vmem>>) attributes {dimension_semantics = [#tpu.dimension_semantics<parallel>], iteration_bounds = array<i64: 1>, scalar_prefetch = 0 : i64, scratch_operands = 2 : i64, tpu.core_type = #tpu.core_type<tc>, window_params = [{transform_indices = @transform_0, window_bounds = array<i64: 8, 28, 28>}, {pipeline_mode = #tpu.pipeline_mode<synchronous>, transform_indices = @transform_1, window_bounds = array<i64: 140, 256>}, {pipeline_mode = #tpu.pipeline_mode<synchronous>, transform_indices = @transform_2, window_bounds = array<i64: 1, 128>}, {pipeline_mode = #tpu.pipeline_mode<synchronous>, transform_indices = @transform_3, window_bounds = array<i64: 640, 256>}, {pipeline_mode = #tpu.pipeline_mode<synchronous>, transform_indices = @transform_4, window_bounds = array<i64: 1, 128>}, {pipeline_mode = #tpu.pipeline_mode<synchronous>, transform_indices = @transform_5, window_bounds = array<i64: 4, 128, 128>}, {pipeline_mode = #tpu.pipeline_mode<synchronous>, transform_indices = @transform_6, window_bounds = array<i64: 1, 128>}, {pipeline_mode = #tpu.pipeline_mode<synchronous>, transform_indices = @transform_7, window_bounds = array<i64: 128, 128>}, {pipeline_mode = #tpu.pipeline_mode<synchronous>, transform_indices = @transform_8, window_bounds = array<i64: 1, 128>}, {transform_indices = @transform_9, window_bounds = array<i64: 8, 128>}]} {
    %c0 = arith.constant 0 : index
    %c0_0 = arith.constant 0 : index
    %c0_1 = arith.constant 0 : index
    %0 = vector.load %arg1[%c0, %c0_0, %c0_1] : memref<8x28x28xbf16, #tpu.memory_space<vmem>>, vector<8x28x28xbf16>
    %1 = arith.extf %0 : vector<8x28x28xbf16> to vector<8x28x28xf32>
    %2 = vector.extract_strided_slice %1 {offsets = [0, 0, 0], sizes = [8, 24, 28], strides = [1, 1, 1]} : vector<8x28x28xf32> to vector<8x24x28xf32>
    %3 = vector.extract_strided_slice %1 {offsets = [0, 1, 0], sizes = [8, 24, 28], strides = [1, 1, 1]} : vector<8x28x28xf32> to vector<8x24x28xf32>
    %4 = vector.extract_strided_slice %1 {offsets = [0, 2, 0], sizes = [8, 24, 28], strides = [1, 1, 1]} : vector<8x28x28xf32> to vector<8x24x28xf32>
    %5 = vector.extract_strided_slice %1 {offsets = [0, 3, 0], sizes = [8, 24, 28], strides = [1, 1, 1]} : vector<8x28x28xf32> to vector<8x24x28xf32>
    %6 = vector.extract_strided_slice %1 {offsets = [0, 4, 0], sizes = [8, 24, 28], strides = [1, 1, 1]} : vector<8x28x28xf32> to vector<8x24x28xf32>
    %7 = tpu.concatenate %2, %3, %4, %5, %6 in 2 : vector<8x24x28xf32>, vector<8x24x28xf32>, vector<8x24x28xf32>, vector<8x24x28xf32>, vector<8x24x28xf32> -> vector<8x24x140xf32>
    %8 = vector.shape_cast %7 : vector<8x24x140xf32> to vector<192x140xf32>
    %9 = arith.truncf %8 : vector<192x140xf32> to vector<192x140xbf16>
    %c0_2 = arith.constant 0 : index
    %c0_3 = arith.constant 0 : index
    %10 = vector.load %arg2[%c0_2, %c0_3] : memref<140x256xbf16, #tpu.memory_space<vmem>>, vector<140x256xbf16>
    %cst = arith.constant dense<0.000000e+00> : vector<192x256xf32>
    %11 = tpu.matmul %9, %10, %cst {dimension_numbers = #tpu.dot_dimension_numbers<[1], [0], [0], [1], [0, 0, 1, 1], [], []>} : vector<192x140xbf16>, vector<140x256xbf16>, vector<192x256xf32> -> vector<192x256xf32>
    %12 = vector.extract_strided_slice %11 {offsets = [0, 0], sizes = [192, 128], strides = [1, 1]} : vector<192x256xf32> to vector<192x128xf32>
    %13 = vector.extract_strided_slice %11 {offsets = [0, 128], sizes = [192, 128], strides = [1, 1]} : vector<192x256xf32> to vector<192x128xf32>
    %14 = arith.maximumf %12, %13 : vector<192x128xf32>
    %15 = vector.shape_cast %14 : vector<192x128xf32> to vector<8x24x128xf32>
    %c0_4 = arith.constant 0 : index
    %c0_5 = arith.constant 0 : index
    %c0_6 = arith.constant 0 : index
    %16 = vector.load %arg11[%c0_4, %c0_5, %c0_6] : memref<8x24x128xf32, #tpu.memory_space<vmem>>, vector<8x24x128xf32>
    tpu.vector_store %arg11[%c0_4, %c0_5, %c0_6], %15 {strides = array<i32>} : memref<8x24x128xf32, #tpu.memory_space<vmem>>, vector<8x24x128xf32>,
    %c0_7 = arith.constant 0 : index
    %c0_8 = arith.constant 0 : index
    %c0_9 = arith.constant 0 : index
    %17 = tpu.strided_load %arg11[%c0_7, %c0_8, %c0_9] {strides = array<i32: 1, 2, 1>} : memref<8x24x128xf32, #tpu.memory_space<vmem>>, vector<8x12x128xf32>
    %c0_10 = arith.constant 0 : index
    %c1 = arith.constant 1 : index
    %c0_11 = arith.constant 0 : index
    %18 = tpu.strided_load %arg11[%c0_10, %c1, %c0_11] {strides = array<i32: 1, 2, 1>} : memref<8x24x128xf32, #tpu.memory_space<vmem>>, vector<8x12x128xf32>
    %19 = arith.maximumf %17, %18 : vector<8x12x128xf32>
    %c0_12 = arith.constant 0 : index
    %c0_13 = arith.constant 0 : index
    %20 = vector.load %arg3[%c0_12, %c0_13] : memref<1x128xf32, #tpu.memory_space<vmem>>, vector<1x128xf32>
    %21 = vector.shape_cast %20 : vector<1x128xf32> to vector<1x1x128xf32>
    %22 = vector.broadcast %21 : vector<1x1x128xf32> to vector<8x12x128xf32>
    %23 = arith.addf %19, %22 : vector<8x12x128xf32>
    %cst_14 = arith.constant 0.000000e+00 : f32
    %24 = vector.broadcast %cst_14 : f32 to vector<8x12x128xf32>
    %25 = arith.maximumf %23, %24 : vector<8x12x128xf32>
    %26 = vector.extract_strided_slice %25 {offsets = [0, 0, 0], sizes = [8, 8, 128], strides = [1, 1, 1]} : vector<8x12x128xf32> to vector<8x8x128xf32>
    %27 = vector.extract_strided_slice %25 {offsets = [0, 1, 0], sizes = [8, 8, 128], strides = [1, 1, 1]} : vector<8x12x128xf32> to vector<8x8x128xf32>
    %28 = vector.extract_strided_slice %25 {offsets = [0, 2, 0], sizes = [8, 8, 128], strides = [1, 1, 1]} : vector<8x12x128xf32> to vector<8x8x128xf32>
    %29 = vector.extract_strided_slice %25 {offsets = [0, 3, 0], sizes = [8, 8, 128], strides = [1, 1, 1]} : vector<8x12x128xf32> to vector<8x8x128xf32>
    %30 = vector.extract_strided_slice %25 {offsets = [0, 4, 0], sizes = [8, 8, 128], strides = [1, 1, 1]} : vector<8x12x128xf32> to vector<8x8x128xf32>
    %31 = tpu.concatenate %26, %27, %28, %29, %30 in 2 : vector<8x8x128xf32>, vector<8x8x128xf32>, vector<8x8x128xf32>, vector<8x8x128xf32>, vector<8x8x128xf32> -> vector<8x8x640xf32>
    %32 = vector.shape_cast %31 : vector<8x8x640xf32> to vector<64x640xf32>
    %33 = arith.truncf %32 : vector<64x640xf32> to vector<64x640xbf16>
    %c0_15 = arith.constant 0 : index
    %c0_16 = arith.constant 0 : index
    %34 = vector.load %arg4[%c0_15, %c0_16] : memref<640x256xbf16, #tpu.memory_space<vmem>>, vector<640x256xbf16>
    %cst_17 = arith.constant dense<0.000000e+00> : vector<64x256xf32>
    %35 = tpu.matmul %33, %34, %cst_17 {dimension_numbers = #tpu.dot_dimension_numbers<[1], [0], [0], [1], [0, 0, 1, 1], [], []>} : vector<64x640xbf16>, vector<640x256xbf16>, vector<64x256xf32> -> vector<64x256xf32>
    %36 = vector.extract_strided_slice %35 {offsets = [0, 0], sizes = [64, 128], strides = [1, 1]} : vector<64x256xf32> to vector<64x128xf32>
    %37 = vector.extract_strided_slice %35 {offsets = [0, 128], sizes = [64, 128], strides = [1, 1]} : vector<64x256xf32> to vector<64x128xf32>
    %38 = arith.maximumf %36, %37 : vector<64x128xf32>
    %39 = vector.shape_cast %38 : vector<64x128xf32> to vector<8x8x128xf32>
    %c0_18 = arith.constant 0 : index
    %c0_19 = arith.constant 0 : index
    %c0_20 = arith.constant 0 : index
    %40 = vector.load %arg12[%c0_18, %c0_19, %c0_20] : memref<8x8x128xf32, #tpu.memory_space<vmem>>, vector<8x8x128xf32>
    tpu.vector_store %arg12[%c0_18, %c0_19, %c0_20], %39 {strides = array<i32>} : memref<8x8x128xf32, #tpu.memory_space<vmem>>, vector<8x8x128xf32>,
    %c0_21 = arith.constant 0 : index
    %c0_22 = arith.constant 0 : index
    %c0_23 = arith.constant 0 : index
    %41 = tpu.strided_load %arg12[%c0_21, %c0_22, %c0_23] {strides = array<i32: 1, 2, 1>} : memref<8x8x128xf32, #tpu.memory_space<vmem>>, vector<8x4x128xf32>
    %c0_24 = arith.constant 0 : index
    %c1_25 = arith.constant 1 : index
    %c0_26 = arith.constant 0 : index
    %42 = tpu.strided_load %arg12[%c0_24, %c1_25, %c0_26] {strides = array<i32: 1, 2, 1>} : memref<8x8x128xf32, #tpu.memory_space<vmem>>, vector<8x4x128xf32>
    %43 = arith.maximumf %41, %42 : vector<8x4x128xf32>
    %c0_27 = arith.constant 0 : index
    %c0_28 = arith.constant 0 : index
    %44 = vector.load %arg5[%c0_27, %c0_28] : memref<1x128xf32, #tpu.memory_space<vmem>>, vector<1x128xf32>
    %45 = vector.shape_cast %44 : vector<1x128xf32> to vector<1x1x128xf32>
    %46 = vector.broadcast %45 : vector<1x1x128xf32> to vector<8x4x128xf32>
    %47 = arith.addf %43, %46 : vector<8x4x128xf32>
    %cst_29 = arith.constant 0.000000e+00 : f32
    %48 = vector.broadcast %cst_29 : f32 to vector<8x4x128xf32>
    %49 = arith.maximumf %47, %48 : vector<8x4x128xf32>
    %cst_30 = arith.constant 0.000000e+00 : f32
    %50 = vector.broadcast %cst_30 : f32 to vector<8x128xf32>
    %51 = vector.extract_strided_slice %49 {offsets = [0, 0, 0], sizes = [8, 1, 128], strides = [1, 1, 1]} : vector<8x4x128xf32> to vector<8x1x128xf32>
    %52 = vector.shape_cast %51 : vector<8x1x128xf32> to vector<8x128xf32>
    %53 = arith.truncf %52 : vector<8x128xf32> to vector<8x128xbf16>
    %c0_31 = arith.constant 0 : index
    %c0_32 = arith.constant 0 : index
    %c0_33 = arith.constant 0 : index
    %54 = vector.load %arg6[%c0_31, %c0_32, %c0_33] : memref<4x128x128xbf16, #tpu.memory_space<vmem>>, vector<1x128x128xbf16>
    %55 = vector.shape_cast %54 : vector<1x128x128xbf16> to vector<128x128xbf16>
    %cst_34 = arith.constant dense<0.000000e+00> : vector<8x128xf32>
    %56 = tpu.matmul %53, %55, %cst_34 {dimension_numbers = #tpu.dot_dimension_numbers<[1], [0], [0], [1], [0, 0, 1, 1], [], []>} : vector<8x128xbf16>, vector<128x128xbf16>, vector<8x128xf32> -> vector<8x128xf32>
    %57 = arith.addf %50, %56 : vector<8x128xf32>
    %58 = vector.extract_strided_slice %49 {offsets = [0, 1, 0], sizes = [8, 1, 128], strides = [1, 1, 1]} : vector<8x4x128xf32> to vector<8x1x128xf32>
    %59 = vector.shape_cast %58 : vector<8x1x128xf32> to vector<8x128xf32>
    %60 = arith.truncf %59 : vector<8x128xf32> to vector<8x128xbf16>
    %c1_35 = arith.constant 1 : index
    %c0_36 = arith.constant 0 : index
    %c0_37 = arith.constant 0 : index
    %61 = vector.load %arg6[%c1_35, %c0_36, %c0_37] : memref<4x128x128xbf16, #tpu.memory_space<vmem>>, vector<1x128x128xbf16>
    %62 = vector.shape_cast %61 : vector<1x128x128xbf16> to vector<128x128xbf16>
    %cst_38 = arith.constant dense<0.000000e+00> : vector<8x128xf32>
    %63 = tpu.matmul %60, %62, %cst_38 {dimension_numbers = #tpu.dot_dimension_numbers<[1], [0], [0], [1], [0, 0, 1, 1], [], []>} : vector<8x128xbf16>, vector<128x128xbf16>, vector<8x128xf32> -> vector<8x128xf32>
    %64 = arith.addf %57, %63 : vector<8x128xf32>
    %65 = vector.extract_strided_slice %49 {offsets = [0, 2, 0], sizes = [8, 1, 128], strides = [1, 1, 1]} : vector<8x4x128xf32> to vector<8x1x128xf32>
    %66 = vector.shape_cast %65 : vector<8x1x128xf32> to vector<8x128xf32>
    %67 = arith.truncf %66 : vector<8x128xf32> to vector<8x128xbf16>
    %c2 = arith.constant 2 : index
    %c0_39 = arith.constant 0 : index
    %c0_40 = arith.constant 0 : index
    %68 = vector.load %arg6[%c2, %c0_39, %c0_40] : memref<4x128x128xbf16, #tpu.memory_space<vmem>>, vector<1x128x128xbf16>
    %69 = vector.shape_cast %68 : vector<1x128x128xbf16> to vector<128x128xbf16>
    %cst_41 = arith.constant dense<0.000000e+00> : vector<8x128xf32>
    %70 = tpu.matmul %67, %69, %cst_41 {dimension_numbers = #tpu.dot_dimension_numbers<[1], [0], [0], [1], [0, 0, 1, 1], [], []>} : vector<8x128xbf16>, vector<128x128xbf16>, vector<8x128xf32> -> vector<8x128xf32>
    %71 = arith.addf %64, %70 : vector<8x128xf32>
    %72 = vector.extract_strided_slice %49 {offsets = [0, 3, 0], sizes = [8, 1, 128], strides = [1, 1, 1]} : vector<8x4x128xf32> to vector<8x1x128xf32>
    %73 = vector.shape_cast %72 : vector<8x1x128xf32> to vector<8x128xf32>
    %74 = arith.truncf %73 : vector<8x128xf32> to vector<8x128xbf16>
    %c3 = arith.constant 3 : index
    %c0_42 = arith.constant 0 : index
    %c0_43 = arith.constant 0 : index
    %75 = vector.load %arg6[%c3, %c0_42, %c0_43] : memref<4x128x128xbf16, #tpu.memory_space<vmem>>, vector<1x128x128xbf16>
    %76 = vector.shape_cast %75 : vector<1x128x128xbf16> to vector<128x128xbf16>
    %cst_44 = arith.constant dense<0.000000e+00> : vector<8x128xf32>
    %77 = tpu.matmul %74, %76, %cst_44 {dimension_numbers = #tpu.dot_dimension_numbers<[1], [0], [0], [1], [0, 0, 1, 1], [], []>} : vector<8x128xbf16>, vector<128x128xbf16>, vector<8x128xf32> -> vector<8x128xf32>
    %78 = arith.addf %71, %77 : vector<8x128xf32>
    %c0_45 = arith.constant 0 : index
    %c0_46 = arith.constant 0 : index
    %79 = vector.load %arg7[%c0_45, %c0_46] : memref<1x128xf32, #tpu.memory_space<vmem>>, vector<1x128xf32>
    %80 = vector.broadcast %79 : vector<1x128xf32> to vector<8x128xf32>
    %81 = arith.addf %78, %80 : vector<8x128xf32>
    %cst_47 = arith.constant 0.000000e+00 : f32
    %82 = vector.broadcast %cst_47 : f32 to vector<8x128xf32>
    %83 = arith.maximumf %81, %82 : vector<8x128xf32>
    %84 = arith.truncf %83 : vector<8x128xf32> to vector<8x128xbf16>
    %c0_48 = arith.constant 0 : index
    %c0_49 = arith.constant 0 : index
    %85 = vector.load %arg8[%c0_48, %c0_49] : memref<128x128xbf16, #tpu.memory_space<vmem>>, vector<128x128xbf16>
    %cst_50 = arith.constant dense<0.000000e+00> : vector<8x128xf32>
    %86 = tpu.matmul %84, %85, %cst_50 {dimension_numbers = #tpu.dot_dimension_numbers<[1], [0], [0], [1], [0, 0, 1, 1], [], []>} : vector<8x128xbf16>, vector<128x128xbf16>, vector<8x128xf32> -> vector<8x128xf32>
    %c0_51 = arith.constant 0 : index
    %c0_52 = arith.constant 0 : index
    %87 = vector.load %arg9[%c0_51, %c0_52] : memref<1x128xf32, #tpu.memory_space<vmem>>, vector<1x128xf32>
    %88 = vector.broadcast %87 : vector<1x128xf32> to vector<8x128xf32>
    %89 = arith.addf %86, %88 : vector<8x128xf32>
    %cst_53 = arith.constant dense<0xFF800000> : vector<8xf32>
    %90 = vector.multi_reduction <maximumf>, %89, %cst_53 [1] : vector<8x128xf32> to vector<8xf32>
    %91 = vector.shape_cast %90 : vector<8xf32> to vector<8x1xf32>
    %92 = vector.broadcast %91 : vector<8x1xf32> to vector<8x128xf32>
    %93 = arith.subf %89, %92 : vector<8x128xf32>
    %94 = math.exp %93 : vector<8x128xf32>
    %cst_54 = arith.constant dense<0.000000e+00> : vector<8xf32>
    %95 = vector.multi_reduction <add>, %94, %cst_54 [1] : vector<8x128xf32> to vector<8xf32>
    %96 = vector.shape_cast %95 : vector<8xf32> to vector<8x1xf32>
    %97 = math.log %96 : vector<8x1xf32>
    %98 = vector.broadcast %97 : vector<8x1xf32> to vector<8x128xf32>
    %99 = arith.subf %93, %98 : vector<8x128xf32>
    %c0_55 = arith.constant 0 : index
    %c0_56 = arith.constant 0 : index
    %100 = vector.load %arg10[%c0_55, %c0_56] : memref<8x128xf32, #tpu.memory_space<vmem>>, vector<8x128xf32>
    tpu.vector_store %arg10[%c0_55, %c0_56], %99 {strides = array<i32>} : memref<8x128xf32, #tpu.memory_space<vmem>>, vector<8x128xf32>,
    return
  }
  func.func @transform_0(%arg0: i32) -> (i32, i32, i32) {
    %c0_i32 = arith.constant 0 : i32
    %c0_i32_0 = arith.constant 0 : i32
    %c0_i32_1 = arith.constant 0 : i32
    return %arg0, %c0_i32, %c0_i32_0 : i32, i32, i32
  }
  func.func @transform_1(%arg0: i32) -> (i32, i32) {
    %c0_i32 = arith.constant 0 : i32
    %c0_i32_0 = arith.constant 0 : i32
    %c0_i32_1 = arith.constant 0 : i32
    return %c0_i32, %c0_i32_0 : i32, i32
  }
  func.func @transform_2(%arg0: i32) -> (i32, i32) {
    %c0_i32 = arith.constant 0 : i32
    %c0_i32_0 = arith.constant 0 : i32
    %c0_i32_1 = arith.constant 0 : i32
    return %c0_i32, %c0_i32_0 : i32, i32
  }
  func.func @transform_3(%arg0: i32) -> (i32, i32) {
    %c0_i32 = arith.constant 0 : i32
    %c0_i32_0 = arith.constant 0 : i32
    %c0_i32_1 = arith.constant 0 : i32
    return %c0_i32, %c0_i32_0 : i32, i32
  }
  func.func @transform_4(%arg0: i32) -> (i32, i32) {
    %c0_i32 = arith.constant 0 : i32
    %c0_i32_0 = arith.constant 0 : i32
    %c0_i32_1 = arith.constant 0 : i32
    return %c0_i32, %c0_i32_0 : i32, i32
  }
  func.func @transform_5(%arg0: i32) -> (i32, i32, i32) {
    %c0_i32 = arith.constant 0 : i32
    %c0_i32_0 = arith.constant 0 : i32
    %c0_i32_1 = arith.constant 0 : i32
    %c0_i32_2 = arith.constant 0 : i32
    return %c0_i32, %c0_i32_0, %c0_i32_1 : i32, i32, i32
  }
  func.func @transform_6(%arg0: i32) -> (i32, i32) {
    %c0_i32 = arith.constant 0 : i32
    %c0_i32_0 = arith.constant 0 : i32
    %c0_i32_1 = arith.constant 0 : i32
    return %c0_i32, %c0_i32_0 : i32, i32
  }
  func.func @transform_7(%arg0: i32) -> (i32, i32) {
    %c0_i32 = arith.constant 0 : i32
    %c0_i32_0 = arith.constant 0 : i32
    %c0_i32_1 = arith.constant 0 : i32
    return %c0_i32, %c0_i32_0 : i32, i32
  }
  func.func @transform_8(%arg0: i32) -> (i32, i32) {
    %c0_i32 = arith.constant 0 : i32
    %c0_i32_0 = arith.constant 0 : i32
    %c0_i32_1 = arith.constant 0 : i32
    return %c0_i32, %c0_i32_0 : i32, i32
  }
  func.func @transform_9(%arg0: i32) -> (i32, i32) {
    %c0_i32 = arith.constant 0 : i32
    %c0_i32_0 = arith.constant 0 : i32
    return %arg0, %c0_i32 : i32, i32
  }
}

</mosaic_0001>

<llo_original>
// kernel: net_forward.1
$region0: #{net_forward.1}
  #allocation0 [shape = 'u32[]', space=smem, size = 0x4, offset = 0x4, fixed_abs, tag = 'smem constant byte address 0x4 - core index']
  #allocation1 [shape = 'u32[144,128]{1,0:T(1,128)}', space=vmem, size = 0x12000, scoped, tag = 'internal scratch']
  #allocation2 [shape = 'f32[8,24,128]{2,1,0:T(8,128)}', space=vmem, size = 0x18000, scoped, tag = 'scratch operand']
  #allocation3 [shape = 'f32[8,8,128]{2,1,0:T(8,128)}', space=vmem, size = 0x8000, scoped, tag = 'scratch operand']
  %s0 = inlined_call_operand.hbm [shape: bf16[8,28,28], index: 0, kind: input, shape index: {}]
  %s1 = inlined_call_operand.hbm [shape: bf16[140,256], index: 1, kind: input, shape index: {}]
  %s2 = inlined_call_operand.hbm [shape: f32[1,128], index: 2, kind: input, shape index: {}]
  %s3 = inlined_call_operand.hbm [shape: bf16[640,256], index: 3, kind: input, shape index: {}]
  %s4 = inlined_call_operand.hbm [shape: f32[1,128], index: 4, kind: input, shape index: {}]
  %s5 = inlined_call_operand.hbm [shape: bf16[4,128,128], index: 5, kind: input, shape index: {}]
  %s6 = inlined_call_operand.hbm [shape: f32[1,128], index: 6, kind: input, shape index: {}]
  %s7 = inlined_call_operand.hbm [shape: bf16[128,128], index: 7, kind: input, shape index: {}]
  %s8 = inlined_call_operand.hbm [shape: f32[1,128], index: 8, kind: input, shape index: {}]
  %s9 = inlined_call_operand.hbm [shape: f32[8,128], index: 9, kind: output, shape index: {}]
  %s10 = sld [smem:[#allocation0]]
  $region82: #{net_forward.1} parent=0
    _
  %s12 = ssub.s32 1, %s10
  %s13 = scalar_select 0, %s12, %s10
  $region1: #{net_forward.1} parent=0
    #allocation4 [shape = 'u8[65536]{0}', space=vmem, size = 0x10000, scoped, tag = 'input window, operand 0, single buffered']
    #allocation5 [shape = 's32[1]{0}', space=sflag, size = 0x4, scoped, tag = 'scoped memory for net_forward.1']
    #allocation6 [shape = 's32[1]{0}', space=sflag, size = 0x4, scoped, tag = 'scoped memory for net_forward.1']
    #allocation7 [shape = 'u8[73728]{0}', space=vmem, size = 0x12000, scoped, tag = 'input window, operand 1, single buffered']
    #allocation8 [shape = 's32[1]{0}', space=sflag, size = 0x4, scoped, tag = 'scoped memory for net_forward.1']
    #allocation9 [shape = 'u8[512]{0}', space=vmem, size = 0x400, scoped, tag = 'input window, operand 2, single buffered']
    #allocation10 [shape = 'u8[327680]{0}', space=vmem, size = 0x50000, scoped, tag = 'input window, operand 3, single buffered']
    #allocation11 [shape = 's32[1]{0}', space=sflag, size = 0x4, scoped, tag = 'scoped memory for net_forward.1']
    #allocation12 [shape = 'u8[512]{0}', space=vmem, size = 0x400, scoped, tag = 'input window, operand 4, single buffered']
    #allocation13 [shape = 'u8[131072]{0}', space=vmem, size = 0x20000, scoped, tag = 'input window, operand 5, single buffered']
    #allocation14 [shape = 's32[1]{0}', space=sflag, size = 0x4, scoped, tag = 'scoped memory for net_forward.1']
    #allocation15 [shape = 'u8[512]{0}', space=vmem, size = 0x400, scoped, tag = 'input window, operand 6, single buffered']
    #allocation16 [shape = 'u8[32768]{0}', space=vmem, size = 0x8000, scoped, tag = 'input window, operand 7, single buffered']
    #allocation17 [shape = 's32[1]{0}', space=sflag, size = 0x4, scoped, tag = 'scoped memory for net_forward.1']
    #allocation18 [shape = 'u8[512]{0}', space=vmem, size = 0x400, scoped, tag = 'input window, operand 8, single buffered']
    #allocation19 [shape = 'u8[4096]{0}', space=vmem, size = 0x1000, scoped, tag = 'output window, operand 0, single buffered']
    %14 = vsyncpa [#allocation5], 0
    %15 = vsyncpa [#allocation8], 0
    %16 = vsyncpa [#allocation11], 0
    %17 = vsyncpa [#allocation14], 0
    %18 = vsyncpa [#allocation17], 0
    %19 = vsyncpa [#allocation6], 0
    // Predicated region
    $region2: #{net_forward.1} parent=1 // pred_check
      _
    $region3: #{net_forward.1} parent=1 // pred_check_branch
      %21 = sbr.rel (0) target = $region5
    $region4: #{net_forward.1} parent=1 // pred_region
      %s23 = ssub.s32 2048, 2048
      %24 = vsyncadd [#allocation5], %s23
      %s25 = sshll.u32 [#allocation4], 4
      %s26 = int_to_ptr.vmem [resolvable:$true] %s25
      %31 = dma.hbm_to_vmem [thread:$0]  %s0, 2048, %s26, [#allocation5], 64, 64, 4
    $region5: #{net_forward.1} parent=1 // pred_fallthru
      _
    // Predicated region
    $region6: #{net_forward.1} parent=1 // pred_check
      _
    $region7: #{net_forward.1} parent=1 // pred_check_branch
      %33 = sbr.rel (0) target = $region9
    $region8: #{net_forward.1} parent=1 // pred_region
      %s35 = ssub.s32 2304, 2304
      %36 = vsyncadd [#allocation8], %s35
      %s37 = sshll.u32 [#allocation7], 4
      %s38 = int_to_ptr.vmem [resolvable:$true] %s37
      %43 = dma.hbm_to_vmem [thread:$0]  %s1, 2304, %s38, [#allocation8], 128, 128, 8
    $region9: #{net_forward.1} parent=1 // pred_fallthru
      _
    // Predicated region
    $region10: #{net_forward.1} parent=1 // pred_check
      _
    $region11: #{net_forward.1} parent=1 // pred_check_branch
      %45 = sbr.rel (0) target = $region13
    $region12: #{net_forward.1} parent=1 // pred_region
      %s47 = ssub.s32 16, 16
      %48 = vsyncadd [#allocation8], %s47
      %s50 = sshll.u32 [#allocation9], 4
      %s51 = int_to_ptr.vmem [resolvable:$true] %s50
      %53 = dma.hbm_to_vmem [thread:$0]  %s2, 16, %s51, [#allocation8]
    $region13: #{net_forward.1} parent=1 // pred_fallthru
      _
    // Predicated region
    $region14: #{net_forward.1} parent=1 // pred_check
      _
    $region15: #{net_forward.1} parent=1 // pred_check_branch
      %55 = sbr.rel (0) target = $region17
    $region16: #{net_forward.1} parent=1 // pred_region
      %s57 = ssub.s32 10240, 10240
      %58 = vsyncadd [#allocation11], %s57
      %s59 = sshll.u32 [#allocation10], 4
      %s60 = int_to_ptr.vmem [resolvable:$true] %s59
      %65 = dma.hbm_to_vmem [thread:$0]  %s3, 10240, %s60, [#allocation11], 128, 128, 8
    $region17: #{net_forward.1} parent=1 // pred_fallthru
      _
    // Predicated region
    $region18: #{net_forward.1} parent=1 // pred_check
      _
    $region19: #{net_forward.1} parent=1 // pred_check_branch
      %67 = sbr.rel (0) target = $region21
    $region20: #{net_forward.1} parent=1 // pred_region
      %s69 = ssub.s32 16, 16
      %70 = vsyncadd [#allocation11], %s69
      %s72 = sshll.u32 [#allocation12], 4
      %s73 = int_to_ptr.vmem [resolvable:$true] %s72
      %75 = dma.hbm_to_vmem [thread:$0]  %s4, 16, %s73, [#allocation11]
    $region21: #{net_forward.1} parent=1 // pred_fallthru
      _
    // Predicated region
    $region22: #{net_forward.1} parent=1 // pred_check
      _
    $region23: #{net_forward.1} parent=1 // pred_check_branch
      %77 = sbr.rel (0) target = $region25
    $region24: #{net_forward.1} parent=1 // pred_region
      %s79 = ssub.s32 4096, 4096
      %80 = vsyncadd [#allocation14], %s79
      %s81 = sshll.u32 [#allocation13], 4
      %s82 = int_to_ptr.vmem [resolvable:$true] %s81
      %87 = dma.hbm_to_vmem [thread:$0]  %s5, 4096, %s82, [#allocation14], 64, 64, 4
    $region25: #{net_forward.1} parent=1 // pred_fallthru
      _
    // Predicated region
    $region26: #{net_forward.1} parent=1 // pred_check
      _
    $region27: #{net_forward.1} parent=1 // pred_check_branch
      %89 = sbr.rel (0) target = $region29
    $region28: #{net_forward.1} parent=1 // pred_region
      %s91 = ssub.s32 16, 16
      %92 = vsyncadd [#allocation14], %s91
      %s94 = sshll.u32 [#allocation15], 4
      %s95 = int_to_ptr.vmem [resolvable:$true] %s94
      %97 = dma.hbm_to_vmem [thread:$0]  %s6, 16, %s95, [#allocation14]
    $region29: #{net_forward.1} parent=1 // pred_fallthru
      _
    // Predicated region
    $region30: #{net_forward.1} parent=1 // pred_check
      _
    $region31: #{net_forward.1} parent=1 // pred_check_branch
      %99 = sbr.rel (0) target = $region33
    $region32: #{net_forward.1} parent=1 // pred_region
      %s101 = ssub.s32 1024, 1024
      %102 = vsyncadd [#allocation17], %s101
      %s103 = sshll.u32 [#allocation16], 4
      %s104 = int_to_ptr.vmem [resolvable:$true] %s103
      %109 = dma.hbm_to_vmem [thread:$0]  %s7, 1024, %s104, [#allocation17], 64, 64, 4
    $region33: #{net_forward.1} parent=1 // pred_fallthru
      _
    // Predicated region
    $region34: #{net_forward.1} parent=1 // pred_check
      _
    $region35: #{net_forward.1} parent=1 // pred_check_branch
      %111 = sbr.rel (0) target = $region37
    $region36: #{net_forward.1} parent=1 // pred_region
      %s113 = ssub.s32 16, 16
      %114 = vsyncadd [#allocation17], %s113
      %s116 = sshll.u32 [#allocation18], 4
      %s117 = int_to_ptr.vmem [resolvable:$true] %s116
      %119 = dma.hbm_to_vmem [thread:$0]  %s8, 16, %s117, [#allocation17]
    $region37: #{net_forward.1} parent=1 // pred_fallthru
      _
    // Predicated region
    $region38: #{net_forward.1} parent=1 // pred_check
      _
    $region39: #{net_forward.1} parent=1 // pred_check_branch
      %121 = sbr.rel (0) target = $region41
    $region40: #{net_forward.1} parent=1 // pred_region
      %122 = dma.done [#allocation5], 2048
    $region41: #{net_forward.1} parent=1 // pred_fallthru
      _
    // Predicated region
    $region42: #{net_forward.1} parent=1 // pred_check
      _
    $region43: #{net_forward.1} parent=1 // pred_check_branch
      %124 = sbr.rel (0) target = $region45
    $region44: #{net_forward.1} parent=1 // pred_region
      %125 = dma.done [#allocation8], 2304
    $region45: #{net_forward.1} parent=1 // pred_fallthru
      _
    // Predicated region
    $region46: #{net_forward.1} parent=1 // pred_check
      _
    $region47: #{net_forward.1} parent=1 // pred_check_branch
      %127 = sbr.rel (0) target = $region49
    $region48: #{net_forward.1} parent=1 // pred_region
      %128 = dma.done [#allocation8], 16
    $region49: #{net_forward.1} parent=1 // pred_fallthru
      _
    // Predicated region
    $region50: #{net_forward.1} parent=1 // pred_check
      _
    $region51: #{net_forward.1} parent=1 // pred_check_branch
      %130 = sbr.rel (0) target = $region53
    $region52: #{net_forward.1} parent=1 // pred_region
      %131 = dma.done [#allocation11], 10240
    $region53: #{net_forward.1} parent=1 // pred_fallthru
      _
    // Predicated region
    $region54: #{net_forward.1} parent=1 // pred_check
      _
    $region55: #{net_forward.1} parent=1 // pred_check_branch
      %133 = sbr.rel (0) target = $region57
    $region56: #{net_forward.1} parent=1 // pred_region
      %134 = dma.done [#allocation11], 16
    $region57: #{net_forward.1} parent=1 // pred_fallthru
      _
    // Predicated region
    $region58: #{net_forward.1} parent=1 // pred_check
      _
    $region59: #{net_forward.1} parent=1 // pred_check_branch
      %136 = sbr.rel (0) target = $region61
    $region60: #{net_forward.1} parent=1 // pred_region
      %137 = dma.done [#allocation14], 4096
    $region61: #{net_forward.1} parent=1 // pred_fallthru
      _
    // Predicated region
    $region62: #{net_forward.1} parent=1 // pred_check
      _
    $region63: #{net_forward.1} parent=1 // pred_check_branch
      %139 = sbr.rel (0) target = $region65
    $region64: #{net_forward.1} parent=1 // pred_region
      %140 = dma.done [#allocation14], 16
    $region65: #{net_forward.1} parent=1 // pred_fallthru
      _
    // Predicated region
    $region66: #{net_forward.1} parent=1 // pred_check
      _
    $region67: #{net_forward.1} parent=1 // pred_check_branch
      %142 = sbr.rel (0) target = $region69
    $region68: #{net_forward.1} parent=1 // pred_region
      %143 = dma.done [#allocation17], 1024
    $region69: #{net_forward.1} parent=1 // pred_fallthru
      _
    // Predicated region
    $region70: #{net_forward.1} parent=1 // pred_check
      _
    $region71: #{net_forward.1} parent=1 // pred_check_branch
      %145 = sbr.rel (0) target = $region73
    $region72: #{net_forward.1} parent=1 // pred_region
      %146 = dma.done [#allocation17], 16
    $region73: #{net_forward.1} parent=1 // pred_fallthru
      _
    %v148 = vld [vmem:[#allocation4] sm:$0xf]
    %v149 = vld [vmem:[#allocation4 + $0x4] sm:$0xf]
    %v150 = vld [vmem:[#allocation4 + $0x8] sm:$0xf]
    %v151 = vld [vmem:[#allocation4 + $0xc] sm:$0x3]
    %v152 = vld [vmem:[#allocation4 + $0x10] sm:$0xf]
    %v153 = vld [vmem:[#allocation4 + $0x14] sm:$0xf]
    %v154 = vld [vmem:[#allocation4 + $0x18] sm:$0xf]
    %v155 = vld [vmem:[#allocation4 + $0x1c] sm:$0x3]
    %v156 = vld [vmem:[#allocation4 + $0x20] sm:$0xf]
    %v157 = vld [vmem:[#allocation4 + $0x24] sm:$0xf]
    %v158 = vld [vmem:[#allocation4 + $0x28] sm:$0xf]
    %v159 = vld [vmem:[#allocation4 + $0x2c] sm:$0x3]
    %v160 = vld [vmem:[#allocation4 + $0x30] sm:$0xf]
    %v161 = vld [vmem:[#allocation4 + $0x34] sm:$0xf]
    %v162 = vld [vmem:[#allocation4 + $0x38] sm:$0xf]
    %v163 = vld [vmem:[#allocation4 + $0x3c] sm:$0x3]
    %v164 = vld [vmem:[#allocation4 + $0x40] sm:$0xf]
    %v165 = vld [vmem:[#allocation4 + $0x44] sm:$0xf]
    %v166 = vld [vmem:[#allocation4 + $0x48] sm:$0xf]
    %v167 = vld [vmem:[#allocation4 + $0x4c] sm:$0x3]
    %v168 = vld [vmem:[#allocation4 + $0x50] sm:$0xf]
    %v169 = vld [vmem:[#allocation4 + $0x54] sm:$0xf]
    %v170 = vld [vmem:[#allocation4 + $0x58] sm:$0xf]
    %v171 = vld [vmem:[#allocation4 + $0x5c] sm:$0x3]
    %v172 = vld [vmem:[#allocation4 + $0x60] sm:$0xf]
    %v173 = vld [vmem:[#allocation4 + $0x64] sm:$0xf]
    %v174 = vld [vmem:[#allocation4 + $0x68] sm:$0xf]
    %v175 = vld [vmem:[#allocation4 + $0x6c] sm:$0x3]
    %v176 = vld [vmem:[#allocation4 + $0x70] sm:$0xf]
    %v177 = vld [vmem:[#allocation4 + $0x74] sm:$0xf]
    %v178 = vld [vmem:[#allocation4 + $0x78] sm:$0xf]
    %v179 = vld [vmem:[#allocation4 + $0x7c] sm:$0x3]
    %v180 = vunpack.c.l.bf16 %v148
    %v181 = vunpack.c.l.bf16 %v149
    %v182 = vunpack.c.l.bf16 %v150
    %v183 = vunpack.c.l.bf16 %v151
    %v184 = vunpack.c.l.bf16 %v152
    %v185 = vunpack.c.l.bf16 %v153
    %v186 = vunpack.c.l.bf16 %v154
    %v187 = vunpack.c.l.bf16 %v155
    %v188 = vunpack.c.l.bf16 %v156
    %v189 = vunpack.c.l.bf16 %v157
    %v190 = vunpack.c.l.bf16 %v158
    %v191 = vunpack.c.l.bf16 %v159
    %v192 = vunpack.c.l.bf16 %v160
    %v193 = vunpack.c.l.bf16 %v161
    %v194 = vunpack.c.l.bf16 %v162
    %v195 = vunpack.c.l.bf16 %v163
    %v196 = vunpack.c.l.bf16 %v164
    %v197 = vunpack.c.l.bf16 %v165
    %v198 = vunpack.c.l.bf16 %v166
    %v199 = vunpack.c.l.bf16 %v167
    %v200 = vunpack.c.l.bf16 %v168
    %v201 = vunpack.c.l.bf16 %v169
    %v202 = vunpack.c.l.bf16 %v170
    %v203 = vunpack.c.l.bf16 %v171
    %v204 = vunpack.c.l.bf16 %v172
    %v205 = vunpack.c.l.bf16 %v173
    %v206 = vunpack.c.l.bf16 %v174
    %v207 = vunpack.c.l.bf16 %v175
    %v208 = vunpack.c.l.bf16 %v176
    %v209 = vunpack.c.l.bf16 %v177
    %v210 = vunpack.c.l.bf16 %v178
    %v211 = vunpack.c.l.bf16 %v179
    %vm244 = vcmask 1046528
    %v245 = vrot.slane %v180, 1
    %v246 = vrot.slane %v181, 1
    %v247 = vsel %vm244, %v245, %v246
    %v248 = vrot.slane %v182, 1
    %v249 = vsel %vm244, %v246, %v248
    %v250 = vrot.slane %v183, 1
    %v251 = vsel %vm244, %v248, %v250
    %v252 = vrot.slane %v184, 1
    %v253 = vrot.slane %v185, 1
    %v254 = vsel %vm244, %v252, %v253
    %v255 = vrot.slane %v186, 1
    %v256 = vsel %vm244, %v253, %v255
    %v257 = vrot.slane %v187, 1
    %v258 = vsel %vm244, %v255, %v257
    %v259 = vrot.slane %v188, 1
    %v260 = vrot.slane %v189, 1
    %v261 = vsel %vm244, %v259, %v260
    %v262 = vrot.slane %v190, 1
    %v263 = vsel %vm244, %v260, %v262
    %v264 = vrot.slane %v191, 1
    %v265 = vsel %vm244, %v262, %v264
    %v266 = vrot.slane %v192, 1
    %v267 = vrot.slane %v193, 1
    %v268 = vsel %vm244, %v266, %v267
    %v269 = vrot.slane %v194, 1
    %v270 = vsel %vm244, %v267, %v269
    %v271 = vrot.slane %v195, 1
    %v272 = vsel %vm244, %v269, %v271
    %v273 = vrot.slane %v196, 1
    %v274 = vrot.slane %v197, 1
    %v275 = vsel %vm244, %v273, %v274
    %v276 = vrot.slane %v198, 1
    %v277 = vsel %vm244, %v274, %v276
    %v278 = vrot.slane %v199, 1
    %v279 = vsel %vm244, %v276, %v278
    %v280 = vrot.slane %v200, 1
    %v281 = vrot.slane %v201, 1
    %v282 = vsel %vm244, %v280, %v281
    %v283 = vrot.slane %v202, 1
    %v284 = vsel %vm244, %v281, %v283
    %v285 = vrot.slane %v203, 1
    %v286 = vsel %vm244, %v283, %v285
    %v287 = vrot.slane %v204, 1
    %v288 = vrot.slane %v205, 1
    %v289 = vsel %vm244, %v287, %v288
    %v290 = vrot.slane %v206, 1
    %v291 = vsel %vm244, %v288, %v290
    %v292 = vrot.slane %v207, 1
    %v293 = vsel %vm244, %v290, %v292
    %v294 = vrot.slane %v208, 1
    %v295 = vrot.slane %v209, 1
    %v296 = vsel %vm244, %v294, %v295
    %v297 = vrot.slane %v210, 1
    %v298 = vsel %vm244, %v295, %v297
    %v299 = vrot.slane %v211, 1
    %v300 = vsel %vm244, %v297, %v299
    %301 = vrot.lane.b32.xlu0 %v247, 28
    %v302 = vpop.permute.xlu0 %301
    %303 = vrot.lane.b32.xlu0 %v249, 28
    %v304 = vpop.permute.xlu0 %303
    %305 = vrot.lane.b32.xlu0 %v251, 28
    %v306 = vpop.permute.xlu0 %305
    %307 = vrot.lane.b32.xlu0 %v254, 28
    %v308 = vpop.permute.xlu0 %307
    %309 = vrot.lane.b32.xlu0 %v256, 28
    %v310 = vpop.permute.xlu0 %309
    %311 = vrot.lane.b32.xlu0 %v258, 28
    %v312 = vpop.permute.xlu0 %311
    %313 = vrot.lane.b32.xlu0 %v261, 28
    %v314 = vpop.permute.xlu0 %313
    %315 = vrot.lane.b32.xlu0 %v263, 28
    %v316 = vpop.permute.xlu0 %315
    %317 = vrot.lane.b32.xlu0 %v265, 28
    %v318 = vpop.permute.xlu0 %317
    %319 = vrot.lane.b32.xlu0 %v268, 28
    %v320 = vpop.permute.xlu0 %319
    %321 = vrot.lane.b32.xlu0 %v270, 28
    %v322 = vpop.permute.xlu0 %321
    %323 = vrot.lane.b32.xlu0 %v272, 28
    %v324 = vpop.permute.xlu0 %323
    %325 = vrot.lane.b32.xlu0 %v275, 28
    %v326 = vpop.permute.xlu0 %325
    %327 = vrot.lane.b32.xlu0 %v277, 28
    %v328 = vpop.permute.xlu0 %327
    %329 = vrot.lane.b32.xlu0 %v279, 28
    %v330 = vpop.permute.xlu0 %329
    %331 = vrot.lane.b32.xlu0 %v282, 28
    %v332 = vpop.permute.xlu0 %331
    %333 = vrot.lane.b32.xlu0 %v284, 28
    %v334 = vpop.permute.xlu0 %333
    %335 = vrot.lane.b32.xlu0 %v286, 28
    %v336 = vpop.permute.xlu0 %335
    %337 = vrot.lane.b32.xlu0 %v289, 28
    %v338 = vpop.permute.xlu0 %337
    %339 = vrot.lane.b32.xlu0 %v291, 28
    %v340 = vpop.permute.xlu0 %339
    %341 = vrot.lane.b32.xlu0 %v293, 28
    %v342 = vpop.permute.xlu0 %341
    %343 = vrot.lane.b32.xlu0 %v296, 28
    %v344 = vpop.permute.xlu0 %343
    %345 = vrot.lane.b32.xlu0 %v298, 28
    %v346 = vpop.permute.xlu0 %345
    %347 = vrot.lane.b32.xlu0 %v300, 28
    %v348 = vpop.permute.xlu0 %347
    %vm373 = vcmask 1045504
    %v374 = vrot.slane %v180, 2
    %v375 = vrot.slane %v181, 2
    %v376 = vsel %vm373, %v374, %v375
    %v377 = vrot.slane %v182, 2
    %v378 = vsel %vm373, %v375, %v377
    %v379 = vrot.slane %v183, 2
    %v380 = vsel %vm373, %v377, %v379
    %v381 = vrot.slane %v184, 2
    %v382 = vrot.slane %v185, 2
    %v383 = vsel %vm373, %v381, %v382
    %v384 = vrot.slane %v186, 2
    %v385 = vsel %vm373, %v382, %v384
    %v386 = vrot.slane %v187, 2
    %v387 = vsel %vm373, %v384, %v386
    %v388 = vrot.slane %v188, 2
    %v389 = vrot.slane %v189, 2
    %v390 = vsel %vm373, %v388, %v389
    %v391 = vrot.slane %v190, 2
    %v392 = vsel %vm373, %v389, %v391
    %v393 = vrot.slane %v191, 2
    %v394 = vsel %vm373, %v391, %v393
    %v395 = vrot.slane %v192, 2
    %v396 = vrot.slane %v193, 2
    %v397 = vsel %vm373, %v395, %v396
    %v398 = vrot.slane %v194, 2
    %v399 = vsel %vm373, %v396, %v398
    %v400 = vrot.slane %v195, 2
    %v401 = vsel %vm373, %v398, %v400
    %v402 = vrot.slane %v196, 2
    %v403 = vrot.slane %v197, 2
    %v404 = vsel %vm373, %v402, %v403
    %v405 = vrot.slane %v198, 2
    %v406 = vsel %vm373, %v403, %v405
    %v407 = vrot.slane %v199, 2
    %v408 = vsel %vm373, %v405, %v407
    %v409 = vrot.slane %v200, 2
    %v410 = vrot.slane %v201, 2
    %v411 = vsel %vm373, %v409, %v410
    %v412 = vrot.slane %v202, 2
    %v413 = vsel %vm373, %v410, %v412
    %v414 = vrot.slane %v203, 2
    %v415 = vsel %vm373, %v412, %v414
    %v416 = vrot.slane %v204, 2
    %v417 = vrot.slane %v205, 2
    %v418 = vsel %vm373, %v416, %v417
    %v419 = vrot.slane %v206, 2
    %v420 = vsel %vm373, %v417, %v419
    %v421 = vrot.slane %v207, 2
    %v422 = vsel %vm373, %v419, %v421
    %v423 = vrot.slane %v208, 2
    %v424 = vrot.slane %v209, 2
    %v425 = vsel %vm373, %v423, %v424
    %v426 = vrot.slane %v210, 2
    %v427 = vsel %vm373, %v424, %v426
    %v428 = vrot.slane %v211, 2
    %v429 = vsel %vm373, %v426, %v428
    %430 = vrot.lane.b32.xlu0 %v376, 56
    %v431 = vpop.permute.xlu0 %430
    %432 = vrot.lane.b32.xlu0 %v378, 56
    %v433 = vpop.permute.xlu0 %432
    %434 = vrot.lane.b32.xlu0 %v380, 56
    %v435 = vpop.permute.xlu0 %434
    %436 = vrot.lane.b32.xlu0 %v383, 56
    %v437 = vpop.permute.xlu0 %436
    %438 = vrot.lane.b32.xlu0 %v385, 56
    %v439 = vpop.permute.xlu0 %438
    %440 = vrot.lane.b32.xlu0 %v387, 56
    %v441 = vpop.permute.xlu0 %440
    %442 = vrot.lane.b32.xlu0 %v390, 56
    %v443 = vpop.permute.xlu0 %442
    %444 = vrot.lane.b32.xlu0 %v392, 56
    %v445 = vpop.permute.xlu0 %444
    %446 = vrot.lane.b32.xlu0 %v394, 56
    %v447 = vpop.permute.xlu0 %446
    %448 = vrot.lane.b32.xlu0 %v397, 56
    %v449 = vpop.permute.xlu0 %448
    %450 = vrot.lane.b32.xlu0 %v399, 56
    %v451 = vpop.permute.xlu0 %450
    %452 = vrot.lane.b32.xlu0 %v401, 56
    %v453 = vpop.permute.xlu0 %452
    %454 = vrot.lane.b32.xlu0 %v404, 56
    %v455 = vpop.permute.xlu0 %454
    %456 = vrot.lane.b32.xlu0 %v406, 56
    %v457 = vpop.permute.xlu0 %456
    %458 = vrot.lane.b32.xlu0 %v408, 56
    %v459 = vpop.permute.xlu0 %458
    %460 = vrot.lane.b32.xlu0 %v411, 56
    %v461 = vpop.permute.xlu0 %460
    %462 = vrot.lane.b32.xlu0 %v413, 56
    %v463 = vpop.permute.xlu0 %462
    %464 = vrot.lane.b32.xlu0 %v415, 56
    %v465 = vpop.permute.xlu0 %464
    %466 = vrot.lane.b32.xlu0 %v418, 56
    %v467 = vpop.permute.xlu0 %466
    %468 = vrot.lane.b32.xlu0 %v420, 56
    %v469 = vpop.permute.xlu0 %468
    %470 = vrot.lane.b32.xlu0 %v422, 56
    %v471 = vpop.permute.xlu0 %470
    %472 = vrot.lane.b32.xlu0 %v425, 56
    %v473 = vpop.permute.xlu0 %472
    %474 = vrot.lane.b32.xlu0 %v427, 56
    %v475 = vpop.permute.xlu0 %474
    %476 = vrot.lane.b32.xlu0 %v429, 56
    %v477 = vpop.permute.xlu0 %476
    %vm502 = vcmask 1044480
    %v503 = vrot.slane %v180, 3
    %v504 = vrot.slane %v181, 3
    %v505 = vsel %vm502, %v503, %v504
    %v506 = vrot.slane %v182, 3
    %v507 = vsel %vm502, %v504, %v506
    %v508 = vrot.slane %v183, 3
    %v509 = vsel %vm502, %v506, %v508
    %v510 = vrot.slane %v184, 3
    %v511 = vrot.slane %v185, 3
    %v512 = vsel %vm502, %v510, %v511
    %v513 = vrot.slane %v186, 3
    %v514 = vsel %vm502, %v511, %v513
    %v515 = vrot.slane %v187, 3
    %v516 = vsel %vm502, %v513, %v515
    %v517 = vrot.slane %v188, 3
    %v518 = vrot.slane %v189, 3
    %v519 = vsel %vm502, %v517, %v518
    %v520 = vrot.slane %v190, 3
    %v521 = vsel %vm502, %v518, %v520
    %v522 = vrot.slane %v191, 3
    %v523 = vsel %vm502, %v520, %v522
    %v524 = vrot.slane %v192, 3
    %v525 = vrot.slane %v193, 3
    %v526 = vsel %vm502, %v524, %v525
    %v527 = vrot.slane %v194, 3
    %v528 = vsel %vm502, %v525, %v527
    %v529 = vrot.slane %v195, 3
    %v530 = vsel %vm502, %v527, %v529
    %v531 = vrot.slane %v196, 3
    %v532 = vrot.slane %v197, 3
    %v533 = vsel %vm502, %v531, %v532
    %v534 = vrot.slane %v198, 3
    %v535 = vsel %vm502, %v532, %v534
    %v536 = vrot.slane %v199, 3
    %v537 = vsel %vm502, %v534, %v536
    %v538 = vrot.slane %v200, 3
    %v539 = vrot.slane %v201, 3
    %v540 = vsel %vm502, %v538, %v539
    %v541 = vrot.slane %v202, 3
    %v542 = vsel %vm502, %v539, %v541
    %v543 = vrot.slane %v203, 3
    %v544 = vsel %vm502, %v541, %v543
    %v545 = vrot.slane %v204, 3
    %v546 = vrot.slane %v205, 3
    %v547 = vsel %vm502, %v545, %v546
    %v548 = vrot.slane %v206, 3
    %v549 = vsel %vm502, %v546, %v548
    %v550 = vrot.slane %v207, 3
    %v551 = vsel %vm502, %v548, %v550
    %v552 = vrot.slane %v208, 3
    %v553 = vrot.slane %v209, 3
    %v554 = vsel %vm502, %v552, %v553
    %v555 = vrot.slane %v210, 3
    %v556 = vsel %vm502, %v553, %v555
    %v557 = vrot.slane %v211, 3
    %v558 = vsel %vm502, %v555, %v557
    %559 = vrot.lane.b32.xlu0 %v505, 84
    %v560 = vpop.permute.xlu0 %559
    %561 = vrot.lane.b32.xlu0 %v507, 84
    %v562 = vpop.permute.xlu0 %561
    %563 = vrot.lane.b32.xlu0 %v509, 84
    %v564 = vpop.permute.xlu0 %563
    %565 = vrot.lane.b32.xlu0 %v512, 84
    %v566 = vpop.permute.xlu0 %565
    %567 = vrot.lane.b32.xlu0 %v514, 84
    %v568 = vpop.permute.xlu0 %567
    %569 = vrot.lane.b32.xlu0 %v516, 84
    %v570 = vpop.permute.xlu0 %569
    %571 = vrot.lane.b32.xlu0 %v519, 84
    %v572 = vpop.permute.xlu0 %571
    %573 = vrot.lane.b32.xlu0 %v521, 84
    %v574 = vpop.permute.xlu0 %573
    %575 = vrot.lane.b32.xlu0 %v523, 84
    %v576 = vpop.permute.xlu0 %575
    %577 = vrot.lane.b32.xlu0 %v526, 84
    %v578 = vpop.permute.xlu0 %577
    %579 = vrot.lane.b32.xlu0 %v528, 84
    %v580 = vpop.permute.xlu0 %579
    %581 = vrot.lane.b32.xlu0 %v530, 84
    %v582 = vpop.permute.xlu0 %581
    %583 = vrot.lane.b32.xlu0 %v533, 84
    %v584 = vpop.permute.xlu0 %583
    %585 = vrot.lane.b32.xlu0 %v535, 84
    %v586 = vpop.permute.xlu0 %585
    %587 = vrot.lane.b32.xlu0 %v537, 84
    %v588 = vpop.permute.xlu0 %587
    %589 = vrot.lane.b32.xlu0 %v540, 84
    %v590 = vpop.permute.xlu0 %589
    %591 = vrot.lane.b32.xlu0 %v542, 84
    %v592 = vpop.permute.xlu0 %591
    %593 = vrot.lane.b32.xlu0 %v544, 84
    %v594 = vpop.permute.xlu0 %593
    %595 = vrot.lane.b32.xlu0 %v547, 84
    %v596 = vpop.permute.xlu0 %595
    %597 = vrot.lane.b32.xlu0 %v549, 84
    %v598 = vpop.permute.xlu0 %597
    %599 = vrot.lane.b32.xlu0 %v551, 84
    %v600 = vpop.permute.xlu0 %599
    %601 = vrot.lane.b32.xlu0 %v554, 84
    %v602 = vpop.permute.xlu0 %601
    %603 = vrot.lane.b32.xlu0 %v556, 84
    %v604 = vpop.permute.xlu0 %603
    %605 = vrot.lane.b32.xlu0 %v558, 84
    %v606 = vpop.permute.xlu0 %605
    %vm631 = vcmask 1043456
    %v632 = vrot.slane %v180, 4
    %v633 = vrot.slane %v181, 4
    %v634 = vsel %vm631, %v632, %v633
    %v635 = vrot.slane %v182, 4
    %v636 = vsel %vm631, %v633, %v635
    %v637 = vrot.slane %v183, 4
    %v638 = vsel %vm631, %v635, %v637
    %v639 = vrot.slane %v184, 4
    %v640 = vrot.slane %v185, 4
    %v641 = vsel %vm631, %v639, %v640
    %v642 = vrot.slane %v186, 4
    %v643 = vsel %vm631, %v640, %v642
    %v644 = vrot.slane %v187, 4
    %v645 = vsel %vm631, %v642, %v644
    %v646 = vrot.slane %v188, 4
    %v647 = vrot.slane %v189, 4
    %v648 = vsel %vm631, %v646, %v647
    %v649 = vrot.slane %v190, 4
    %v650 = vsel %vm631, %v647, %v649
    %v651 = vrot.slane %v191, 4
    %v652 = vsel %vm631, %v649, %v651
    %v653 = vrot.slane %v192, 4
    %v654 = vrot.slane %v193, 4
    %v655 = vsel %vm631, %v653, %v654
    %v656 = vrot.slane %v194, 4
    %v657 = vsel %vm631, %v654, %v656
    %v658 = vrot.slane %v195, 4
    %v659 = vsel %vm631, %v656, %v658
    %v660 = vrot.slane %v196, 4
    %v661 = vrot.slane %v197, 4
    %v662 = vsel %vm631, %v660, %v661
    %v663 = vrot.slane %v198, 4
    %v664 = vsel %vm631, %v661, %v663
    %v665 = vrot.slane %v199, 4
    %v666 = vsel %vm631, %v663, %v665
    %v667 = vrot.slane %v200, 4
    %v668 = vrot.slane %v201, 4
    %v669 = vsel %vm631, %v667, %v668
    %v670 = vrot.slane %v202, 4
    %v671 = vsel %vm631, %v668, %v670
    %v672 = vrot.slane %v203, 4
    %v673 = vsel %vm631, %v670, %v672
    %v674 = vrot.slane %v204, 4
    %v675 = vrot.slane %v205, 4
    %v676 = vsel %vm631, %v674, %v675
    %v677 = vrot.slane %v206, 4
    %v678 = vsel %vm631, %v675, %v677
    %v679 = vrot.slane %v207, 4
    %v680 = vsel %vm631, %v677, %v679
    %v681 = vrot.slane %v208, 4
    %v682 = vrot.slane %v209, 4
    %v683 = vsel %vm631, %v681, %v682
    %v684 = vrot.slane %v210, 4
    %v685 = vsel %vm631, %v682, %v684
    %v686 = vrot.slane %v211, 4
    %v687 = vsel %vm631, %v684, %v686
    %688 = vrot.lane.b32.xlu0 %v634, 112
    %v689 = vpop.permute.xlu0 %688
    %690 = vrot.lane.b32.xlu0 %v636, 112
    %v691 = vpop.permute.xlu0 %690
    %692 = vrot.lane.b32.xlu0 %v638, 112
    %v693 = vpop.permute.xlu0 %692
    %694 = vrot.lane.b32.xlu0 %v641, 112
    %v695 = vpop.permute.xlu0 %694
    %696 = vrot.lane.b32.xlu0 %v643, 112
    %v697 = vpop.permute.xlu0 %696
    %698 = vrot.lane.b32.xlu0 %v645, 112
    %v699 = vpop.permute.xlu0 %698
    %700 = vrot.lane.b32.xlu0 %v648, 112
    %v701 = vpop.permute.xlu0 %700
    %702 = vrot.lane.b32.xlu0 %v650, 112
    %v703 = vpop.permute.xlu0 %702
    %704 = vrot.lane.b32.xlu0 %v652, 112
    %v705 = vpop.permute.xlu0 %704
    %706 = vrot.lane.b32.xlu0 %v655, 112
    %v707 = vpop.permute.xlu0 %706
    %708 = vrot.lane.b32.xlu0 %v657, 112
    %v709 = vpop.permute.xlu0 %708
    %710 = vrot.lane.b32.xlu0 %v659, 112
    %v711 = vpop.permute.xlu0 %710
    %712 = vrot.lane.b32.xlu0 %v662, 112
    %v713 = vpop.permute.xlu0 %712
    %714 = vrot.lane.b32.xlu0 %v664, 112
    %v715 = vpop.permute.xlu0 %714
    %716 = vrot.lane.b32.xlu0 %v666, 112
    %v717 = vpop.permute.xlu0 %716
    %718 = vrot.lane.b32.xlu0 %v669, 112
    %v719 = vpop.permute.xlu0 %718
    %720 = vrot.lane.b32.xlu0 %v671, 112
    %v721 = vpop.permute.xlu0 %720
    %722 = vrot.lane.b32.xlu0 %v673, 112
    %v723 = vpop.permute.xlu0 %722
    %724 = vrot.lane.b32.xlu0 %v676, 112
    %v725 = vpop.permute.xlu0 %724
    %726 = vrot.lane.b32.xlu0 %v678, 112
    %v727 = vpop.permute.xlu0 %726
    %728 = vrot.lane.b32.xlu0 %v680, 112
    %v729 = vpop.permute.xlu0 %728
    %730 = vrot.lane.b32.xlu0 %v683, 112
    %v731 = vpop.permute.xlu0 %730
    %732 = vrot.lane.b32.xlu0 %v685, 112
    %v733 = vpop.permute.xlu0 %732
    %734 = vrot.lane.b32.xlu0 %v687, 112
    %v735 = vpop.permute.xlu0 %734
    %vm760 = vcmask 228352
    %v761 = vsel %vm760, %v180, %v302
    %v762 = vsel %vm760, %v181, %v304
    %v763 = vsel %vm760, %v182, %v306
    %v764 = vsel %vm760, %v184, %v308
    %v765 = vsel %vm760, %v185, %v310
    %v766 = vsel %vm760, %v186, %v312
    %v767 = vsel %vm760, %v188, %v314
    %v768 = vsel %vm760, %v189, %v316
    %v769 = vsel %vm760, %v190, %v318
    %v770 = vsel %vm760, %v192, %v320
    %v771 = vsel %vm760, %v193, %v322
    %v772 = vsel %vm760, %v194, %v324
    %v773 = vsel %vm760, %v196, %v326
    %v774 = vsel %vm760, %v197, %v328
    %v775 = vsel %vm760, %v198, %v330
    %v776 = vsel %vm760, %v200, %v332
    %v777 = vsel %vm760, %v201, %v334
    %v778 = vsel %vm760, %v202, %v336
    %v779 = vsel %vm760, %v204, %v338
    %v780 = vsel %vm760, %v205, %v340
    %v781 = vsel %vm760, %v206, %v342
    %v782 = vsel %vm760, %v208, %v344
    %v783 = vsel %vm760, %v209, %v346
    %v784 = vsel %vm760, %v210, %v348
    %vm785 = vcmask 457728
    %v786 = vsel %vm785, %v761, %v431
    %v787 = vsel %vm785, %v762, %v433
    %v788 = vsel %vm785, %v763, %v435
    %v789 = vsel %vm785, %v764, %v437
    %v790 = vsel %vm785, %v765, %v439
    %v791 = vsel %vm785, %v766, %v441
    %v792 = vsel %vm785, %v767, %v443
    %v793 = vsel %vm785, %v768, %v445
    %v794 = vsel %vm785, %v769, %v447
    %v795 = vsel %vm785, %v770, %v449
    %v796 = vsel %vm785, %v771, %v451
    %v797 = vsel %vm785, %v772, %v453
    %v798 = vsel %vm785, %v773, %v455
    %v799 = vsel %vm785, %v774, %v457
    %v800 = vsel %vm785, %v775, %v459
    %v801 = vsel %vm785, %v776, %v461
    %v802 = vsel %vm785, %v777, %v463
    %v803 = vsel %vm785, %v778, %v465
    %v804 = vsel %vm785, %v779, %v467
    %v805 = vsel %vm785, %v780, %v469
    %v806 = vsel %vm785, %v781, %v471
    %v807 = vsel %vm785, %v782, %v473
    %v808 = vsel %vm785, %v783, %v475
    %v809 = vsel %vm785, %v784, %v477
    %vm810 = vcmask 687104
    %v811 = vsel %vm810, %v786, %v560
    %v812 = vsel %vm810, %v787, %v562
    %v813 = vsel %vm810, %v788, %v564
    %v814 = vsel %vm810, %v789, %v566
    %v815 = vsel %vm810, %v790, %v568
    %v816 = vsel %vm810, %v791, %v570
    %v817 = vsel %vm810, %v792, %v572
    %v818 = vsel %vm810, %v793, %v574
    %v819 = vsel %vm810, %v794, %v576
    %v820 = vsel %vm810, %v795, %v578
    %v821 = vsel %vm810, %v796, %v580
    %v822 = vsel %vm810, %v797, %v582
    %v823 = vsel %vm810, %v798, %v584
    %v824 = vsel %vm810, %v799, %v586
    %v825 = vsel %vm810, %v800, %v588
    %v826 = vsel %vm810, %v801, %v590
    %v827 = vsel %vm810, %v802, %v592
    %v828 = vsel %vm810, %v803, %v594
    %v829 = vsel %vm810, %v804, %v596
    %v830 = vsel %vm810, %v805, %v598
    %v831 = vsel %vm810, %v806, %v600
    %v832 = vsel %vm810, %v807, %v602
    %v833 = vsel %vm810, %v808, %v604
    %v834 = vsel %vm810, %v809, %v606
    %vm835 = vcmask 916480
    %v836 = vsel %vm835, %v811, %v689
    %v837 = vsel %vm835, %v812, %v691
    %v838 = vsel %vm835, %v813, %v693
    %v839 = vsel %vm835, %v814, %v695
    %v840 = vsel %vm835, %v815, %v697
    %v841 = vsel %vm835, %v816, %v699
    %v842 = vsel %vm835, %v817, %v701
    %v843 = vsel %vm835, %v818, %v703
    %v844 = vsel %vm835, %v819, %v705
    %v845 = vsel %vm835, %v820, %v707
    %v846 = vsel %vm835, %v821, %v709
    %v847 = vsel %vm835, %v822, %v711
    %v848 = vsel %vm835, %v823, %v713
    %v849 = vsel %vm835, %v824, %v715
    %v850 = vsel %vm835, %v825, %v717
    %v851 = vsel %vm835, %v826, %v719
    %v852 = vsel %vm835, %v827, %v721
    %v853 = vsel %vm835, %v828, %v723
    %v854 = vsel %vm835, %v829, %v725
    %v855 = vsel %vm835, %v830, %v727
    %v856 = vsel %vm835, %v831, %v729
    %v857 = vsel %vm835, %v832, %v731
    %v858 = vsel %vm835, %v833, %v733
    %v859 = vsel %vm835, %v834, %v735
    %v860 = vpack.c.bf16 %v837, %v836
    %v861 = vpack.c.bf16 %v691, %v689
    %v862 = vpack.c.bf16 %v839, %v838
    %v863 = vpack.c.bf16 %v695, %v693
    %v864 = vpack.c.bf16 %v841, %v840
    %v865 = vpack.c.bf16 %v699, %v697
    %v866 = vpack.c.bf16 %v843, %v842
    %v867 = vpack.c.bf16 %v703, %v701
    %v868 = vpack.c.bf16 %v845, %v844
    %v869 = vpack.c.bf16 %v707, %v705
    %v870 = vpack.c.bf16 %v847, %v846
    %v871 = vpack.c.bf16 %v711, %v709
    %v872 = vpack.c.bf16 %v849, %v848
    %v873 = vpack.c.bf16 %v715, %v713
    %v874 = vpack.c.bf16 %v851, %v850
    %v875 = vpack.c.bf16 %v719, %v717
    %v876 = vpack.c.bf16 %v853, %v852
    %v877 = vpack.c.bf16 %v723, %v721
    %v878 = vpack.c.bf16 %v855, %v854
    %v879 = vpack.c.bf16 %v727, %v725
    %v880 = vpack.c.bf16 %v857, %v856
    %v881 = vpack.c.bf16 %v731, %v729
    %v882 = vpack.c.bf16 %v859, %v858
    %v883 = vpack.c.bf16 %v735, %v733
    %v884 = vld [vmem:[#allocation7] sm:$0xff]
    %v885 = vld [vmem:[#allocation7 + $0x8] sm:$0xff]
    %v886 = vld [vmem:[#allocation7 + $0x10] sm:$0xff]
    %v887 = vld [vmem:[#allocation7 + $0x18] sm:$0xff]
    %v888 = vld [vmem:[#allocation7 + $0x20] sm:$0xff]
    %v889 = vld [vmem:[#allocation7 + $0x28] sm:$0xff]
    %v890 = vld [vmem:[#allocation7 + $0x30] sm:$0xff]
    %v891 = vld [vmem:[#allocation7 + $0x38] sm:$0xff]
    %v892 = vld [vmem:[#allocation7 + $0x40] sm:$0xff]
    %v893 = vld [vmem:[#allocation7 + $0x48] sm:$0xff]
    %v894 = vld [vmem:[#allocation7 + $0x50] sm:$0xff]
    %v895 = vld [vmem:[#allocation7 + $0x58] sm:$0xff]
    %v896 = vld [vmem:[#allocation7 + $0x60] sm:$0xff]
    %v897 = vld [vmem:[#allocation7 + $0x68] sm:$0xff]
    %v898 = vld [vmem:[#allocation7 + $0x70] sm:$0xff]
    %v899 = vld [vmem:[#allocation7 + $0x78] sm:$0xff]
    %v900 = vld [vmem:[#allocation7 + $0x80] sm:$0xff]
    %v901 = vld [vmem:[#allocation7 + $0x88] sm:$0x33]
    %v920 = vunpack.c.l.b16 %v884
    %v921 = vunpack.c.h.b16 %v884
    %v922 = vunpack.c.l.b16 %v885
    %v923 = vunpack.c.h.b16 %v885
    %v924 = vunpack.c.l.b16 %v886
    %v925 = vunpack.c.h.b16 %v886
    %v926 = vunpack.c.l.b16 %v887
    %v927 = vunpack.c.h.b16 %v887
    %v928 = vunpack.c.l.b16 %v888
    %v929 = vunpack.c.h.b16 %v888
    %v930 = vunpack.c.l.b16 %v889
    %v931 = vunpack.c.h.b16 %v889
    %v932 = vunpack.c.l.b16 %v890
    %v933 = vunpack.c.h.b16 %v890
    %v934 = vunpack.c.l.b16 %v891
    %v935 = vunpack.c.h.b16 %v891
    %v936 = vunpack.c.l.b16 %v892
    %v937 = vunpack.c.h.b16 %v892
    %v938 = vunpack.c.l.b16 %v893
    %v939 = vunpack.c.h.b16 %v893
    %v940 = vunpack.c.l.b16 %v894
    %v941 = vunpack.c.h.b16 %v894
    %v942 = vunpack.c.l.b16 %v895
    %v943 = vunpack.c.h.b16 %v895
    %v944 = vunpack.c.l.b16 %v896
    %v945 = vunpack.c.h.b16 %v896
    %v946 = vunpack.c.l.b16 %v897
    %v947 = vunpack.c.h.b16 %v897
    %v948 = vunpack.c.l.b16 %v898
    %v949 = vunpack.c.h.b16 %v898
    %v950 = vunpack.c.l.b16 %v899
    %v951 = vunpack.c.h.b16 %v899
    %v952 = vunpack.c.l.b16 %v900
    %v953 = vunpack.c.h.b16 %v900
    %v954 = vunpack.c.l.b16 %v901
    %v955 = vunpack.c.h.b16 %v901
    %v956 = vpack.c.b16 %v922, %v920
    %v957 = vpack.c.b16 %v923, %v921
    %v958 = vpack.c.b16 %v926, %v924
    %v959 = vpack.c.b16 %v927, %v925
    %v960 = vpack.c.b16 %v930, %v928
    %v961 = vpack.c.b16 %v931, %v929
    %v962 = vpack.c.b16 %v934, %v932
    %v963 = vpack.c.b16 %v935, %v933
    %v964 = vpack.c.b16 %v938, %v936
    %v965 = vpack.c.b16 %v939, %v937
    %v966 = vpack.c.b16 %v942, %v940
    %v967 = vpack.c.b16 %v943, %v941
    %v968 = vpack.c.b16 %v946, %v944
    %v969 = vpack.c.b16 %v947, %v945
    %v970 = vpack.c.b16 %v950, %v948
    %v971 = vpack.c.b16 %v951, %v949
    %v972 = vpack.c.b16 %v954, %v952
    %v973 = vpack.c.b16 %v955, %v953
    %vm990 = vcmask 97280
    %v992 = vsel %vm990, %v861, 0
    %v995 = vsel %vm990, %v863, 0
    %v998 = vsel %vm990, %v865, 0
    %v1001 = vsel %vm990, %v867, 0
    %v1004 = vsel %vm990, %v869, 0
    %v1007 = vsel %vm990, %v871, 0
    %v1010 = vsel %vm990, %v873, 0
    %v1013 = vsel %vm990, %v875, 0
    %v1016 = vsel %vm990, %v877, 0
    %v1019 = vsel %vm990, %v879, 0
    %v1022 = vsel %vm990, %v881, 0
    %v1025 = vsel %vm990, %v883, 0
    %v1028 = vsel %vm373, %v972, 0
    %v1031 = vsel %vm373, %v973, 0
    %1033 = vmatprep.subr.bf16.mxu0 %v971
    %1034 = vmatpush1.bf16.msra.mxu0 %v970
    %1035 = vmatprep.subr.bf16.mxu0 %v969
    %1036 = vmatpush1.bf16.msra.mxu0 %v968
    %1037 = vmatprep.subr.bf16.mxu0 %v967
    %1038 = vmatpush1.bf16.msra.mxu0 %v966
    %1039 = vmatprep.subr.bf16.mxu0 %v965
    %1040 = vmatpush1.bf16.msra.mxu0 %v964
    %1041 = vmatprep.subr.bf16.mxu0 %v963
    %1042 = vmatpush1.bf16.msra.mxu0 %v962
    %1043 = vmatprep.subr.bf16.mxu0 %v961
    %1044 = vmatpush1.bf16.msra.mxu0 %v960
    %1045 = vmatprep.subr.bf16.mxu0 %v959
    %1046 = vmatpush1.bf16.msra.mxu0 %v958
    %1047 = vmatprep.subr.bf16.mxu0 %v957
    %1048 = vmatpush1.bf16.msra.mxu0 %v956
    %1049 = vmatprep.subr.bf16.mxu0 0
    %1050 = vmatpush2.bf16.msra.mxu0 0
    %1051 = vmatprep.subr.bf16.mxu0 0
    %1052 = vmatpush2.bf16.msra.mxu0 0
    %1053 = vmatprep.subr.bf16.mxu0 0
    %1054 = vmatpush2.bf16.msra.mxu0 0
    %1055 = vmatprep.subr.bf16.mxu0 0
    %1056 = vmatpush2.bf16.msra.mxu0 0
    %1057 = vmatprep.subr.bf16.mxu0 0
    %1058 = vmatpush2.bf16.msra.mxu0 0
    %1059 = vmatprep.subr.bf16.mxu0 0
    %1060 = vmatpush2.bf16.msra.mxu0 0
    %1061 = vmatprep.subr.bf16.mxu0 0
    %1062 = vmatpush2.bf16.msra.mxu0 0
    %1063 = vmatprep.subr.bf16.mxu0 %v1031
    %1064 = vmatpush2.bf16.msra.mxu0 %v1028
    %1065 = vmatprep.mubr.bf16.mxu0 %v992
    %1066 = vmatmul.mubr.bf16.gmra.mxu0 %v860
    %v1067 = vpop.f32.mrf.mxu0
    %v1068 = vadd.f32 0.0, %v1067
    %v1069 = vpop.f32.mrf.mxu0
    %v1070 = vadd.f32 0.0, %v1069
    %v1071 = vpop.f32.mrf.mxu0
    %v1072 = vadd.f32 0.0, %v1071
    %v1073 = vpop.f32.mrf.mxu0
    %v1074 = vadd.f32 0.0, %v1073
    %1075 = vmatprep.mubr.bf16.mxu0 %v995
    %1076 = vmatmul.mubr.bf16.gmra.mxu0 %v862
    %v1077 = vpop.f32.mrf.mxu0
    %v1078 = vadd.f32 0.0, %v1077
    %v1079 = vpop.f32.mrf.mxu0
    %v1080 = vadd.f32 0.0, %v1079
    %v1081 = vpop.f32.mrf.mxu0
    %v1082 = vadd.f32 0.0, %v1081
    %v1083 = vpop.f32.mrf.mxu0
    %v1084 = vadd.f32 0.0, %v1083
    %1085 = vmatprep.mubr.bf16.mxu0 %v998
    %1086 = vmatmul.mubr.bf16.gmra.mxu0 %v864
    %v1087 = vpop.f32.mrf.mxu0
    %v1088 = vadd.f32 0.0, %v1087
    %v1089 = vpop.f32.mrf.mxu0
    %v1090 = vadd.f32 0.0, %v1089
    %v1091 = vpop.f32.mrf.mxu0
    %v1092 = vadd.f32 0.0, %v1091
    %v1093 = vpop.f32.mrf.mxu0
    %v1094 = vadd.f32 0.0, %v1093
    %1095 = vmatprep.mubr.bf16.mxu0 %v1001
    %1096 = vmatmul.mubr.bf16.gmra.mxu0 %v866
    %v1097 = vpop.f32.mrf.mxu0
    %v1098 = vadd.f32 0.0, %v1097
    %v1099 = vpop.f32.mrf.mxu0
    %v1100 = vadd.f32 0.0, %v1099
    %v1101 = vpop.f32.mrf.mxu0
    %v1102 = vadd.f32 0.0, %v1101
    %v1103 = vpop.f32.mrf.mxu0
    %v1104 = vadd.f32 0.0, %v1103
    %1105 = vmatprep.mubr.bf16.mxu0 %v1004
    %1106 = vmatmul.mubr.bf16.gmra.mxu0 %v868
    %v1107 = vpop.f32.mrf.mxu0
    %v1108 = vadd.f32 0.0, %v1107
    %v1109 = vpop.f32.mrf.mxu0
    %v1110 = vadd.f32 0.0, %v1109
    %v1111 = vpop.f32.mrf.mxu0
    %v1112 = vadd.f32 0.0, %v1111
    %v1113 = vpop.f32.mrf.mxu0
    %v1114 = vadd.f32 0.0, %v1113
    %1115 = vmatprep.mubr.bf16.mxu0 %v1007
    %1116 = vmatmul.mubr.bf16.gmra.mxu0 %v870
    %v1117 = vpop.f32.mrf.mxu0
    %v1118 = vadd.f32 0.0, %v1117
    %v1119 = vpop.f32.mrf.mxu0
    %v1120 = vadd.f32 0.0, %v1119
    %v1121 = vpop.f32.mrf.mxu0
    %v1122 = vadd.f32 0.0, %v1121
    %v1123 = vpop.f32.mrf.mxu0
    %v1124 = vadd.f32 0.0, %v1123
    %1125 = vmatprep.mubr.bf16.mxu0 %v1010
    %1126 = vmatmul.mubr.bf16.gmra.mxu0 %v872
    %v1127 = vpop.f32.mrf.mxu0
    %v1128 = vadd.f32 0.0, %v1127
    %v1129 = vpop.f32.mrf.mxu0
    %v1130 = vadd.f32 0.0, %v1129
    %v1131 = vpop.f32.mrf.mxu0
    %v1132 = vadd.f32 0.0, %v1131
    %v1133 = vpop.f32.mrf.mxu0
    %v1134 = vadd.f32 0.0, %v1133
    %1135 = vmatprep.mubr.bf16.mxu0 %v1013
    %1136 = vmatmul.mubr.bf16.gmra.mxu0 %v874
    %v1137 = vpop.f32.mrf.mxu0
    %v1138 = vadd.f32 0.0, %v1137
    %v1139 = vpop.f32.mrf.mxu0
    %v1140 = vadd.f32 0.0, %v1139
    %v1141 = vpop.f32.mrf.mxu0
    %v1142 = vadd.f32 0.0, %v1141
    %v1143 = vpop.f32.mrf.mxu0
    %v1144 = vadd.f32 0.0, %v1143
    %1145 = vmatprep.mubr.bf16.mxu0 %v1016
    %1146 = vmatmul.mubr.bf16.gmra.mxu0 %v876
    %v1147 = vpop.f32.mrf.mxu0
    %v1148 = vadd.f32 0.0, %v1147
    %v1149 = vpop.f32.mrf.mxu0
    %v1150 = vadd.f32 0.0, %v1149
    %v1151 = vpop.f32.mrf.mxu0
    %v1152 = vadd.f32 0.0, %v1151
    %v1153 = vpop.f32.mrf.mxu0
    %v1154 = vadd.f32 0.0, %v1153
    %1155 = vmatprep.mubr.bf16.mxu0 %v1019
    %1156 = vmatmul.mubr.bf16.gmra.mxu0 %v878
    %v1157 = vpop.f32.mrf.mxu0
    %v1158 = vadd.f32 0.0, %v1157
    %v1159 = vpop.f32.mrf.mxu0
    %v1160 = vadd.f32 0.0, %v1159
    %v1161 = vpop.f32.mrf.mxu0
    %v1162 = vadd.f32 0.0, %v1161
    %v1163 = vpop.f32.mrf.mxu0
    %v1164 = vadd.f32 0.0, %v1163
    %1165 = vmatprep.mubr.bf16.mxu0 %v1022
    %1166 = vmatmul.mubr.bf16.gmra.mxu0 %v880
    %v1167 = vpop.f32.mrf.mxu0
    %v1168 = vadd.f32 0.0, %v1167
    %v1169 = vpop.f32.mrf.mxu0
    %v1170 = vadd.f32 0.0, %v1169
    %v1171 = vpop.f32.mrf.mxu0
    %v1172 = vadd.f32 0.0, %v1171
    %v1173 = vpop.f32.mrf.mxu0
    %v1174 = vadd.f32 0.0, %v1173
    %1175 = vmatprep.mubr.bf16.mxu0 %v1025
    %1176 = vmatmul.mubr.bf16.gmra.mxu0 %v882
    %v1177 = vpop.f32.mrf.mxu0
    %v1178 = vadd.f32 0.0, %v1177
    %v1179 = vpop.f32.mrf.mxu0
    %v1180 = vadd.f32 0.0, %v1179
    %v1181 = vpop.f32.mrf.mxu0
    %v1182 = vadd.f32 0.0, %v1181
    %v1183 = vpop.f32.mrf.mxu0
    %v1184 = vadd.f32 0.0, %v1183
    %1185 = vdwg.mxu0
    %v1186 = vmax.f32 %v1068, %v1070
    %v1187 = vmax.f32 %v1072, %v1074
    %v1188 = vmax.f32 %v1078, %v1080
    %v1189 = vmax.f32 %v1082, %v1084
    %v1190 = vmax.f32 %v1088, %v1090
    %v1191 = vmax.f32 %v1092, %v1094
    %v1192 = vmax.f32 %v1098, %v1100
    %v1193 = vmax.f32 %v1102, %v1104
    %v1194 = vmax.f32 %v1108, %v1110
    %v1195 = vmax.f32 %v1112, %v1114
    %v1196 = vmax.f32 %v1118, %v1120
    %v1197 = vmax.f32 %v1122, %v1124
    %v1198 = vmax.f32 %v1128, %v1130
    %v1199 = vmax.f32 %v1132, %v1134
    %v1200 = vmax.f32 %v1138, %v1140
    %v1201 = vmax.f32 %v1142, %v1144
    %v1202 = vmax.f32 %v1148, %v1150
    %v1203 = vmax.f32 %v1152, %v1154
    %v1204 = vmax.f32 %v1158, %v1160
    %v1205 = vmax.f32 %v1162, %v1164
    %v1206 = vmax.f32 %v1168, %v1170
    %v1207 = vmax.f32 %v1172, %v1174
    %v1208 = vmax.f32 %v1178, %v1180
    %v1209 = vmax.f32 %v1182, %v1184
    %1210 = vst [vmem:[#allocation2] sm:$0xff] %v1186
    %1211 = vst [vmem:[#allocation2 + $0x8] sm:$0xff] %v1187
    %1212 = vst [vmem:[#allocation2 + $0x10] sm:$0xff] %v1188
    %1213 = vst [vmem:[#allocation2 + $0x18] sm:$0xff] %v1189
    %1214 = vst [vmem:[#allocation2 + $0x20] sm:$0xff] %v1190
    %1215 = vst [vmem:[#allocation2 + $0x28] sm:$0xff] %v1191
    %1216 = vst [vmem:[#allocation2 + $0x30] sm:$0xff] %v1192
    %1217 = vst [vmem:[#allocation2 + $0x38] sm:$0xff] %v1193
    %1218 = vst [vmem:[#allocation2 + $0x40] sm:$0xff] %v1194
    %1219 = vst [vmem:[#allocation2 + $0x48] sm:$0xff] %v1195
    %1220 = vst [vmem:[#allocation2 + $0x50] sm:$0xff] %v1196
    %1221 = vst [vmem:[#allocation2 + $0x58] sm:$0xff] %v1197
    %1222 = vst [vmem:[#allocation2 + $0x60] sm:$0xff] %v1198
    %1223 = vst [vmem:[#allocation2 + $0x68] sm:$0xff] %v1199
    %1224 = vst [vmem:[#allocation2 + $0x70] sm:$0xff] %v1200
    %1225 = vst [vmem:[#allocation2 + $0x78] sm:$0xff] %v1201
    %1226 = vst [vmem:[#allocation2 + $0x80] sm:$0xff] %v1202
    %1227 = vst [vmem:[#allocation2 + $0x88] sm:$0xff] %v1203
    %1228 = vst [vmem:[#allocation2 + $0x90] sm:$0xff] %v1204
    %1229 = vst [vmem:[#allocation2 + $0x98] sm:$0xff] %v1205
    %1230 = vst [vmem:[#allocation2 + $0xa0] sm:$0xff] %v1206
    %1231 = vst [vmem:[#allocation2 + $0xa8] sm:$0xff] %v1207
    %1232 = vst [vmem:[#allocation2 + $0xb0] sm:$0xff] %v1208
    %1233 = vst [vmem:[#allocation2 + $0xb8] sm:$0xff] %v1209
    %v1234 = vld [vmem:[#allocation2] ss:$2 sm:$0xff]
    %s1235 = scalar_lea.vmem [#allocation2], 16
    %v1236 = vld [vmem:[%s1235] ss:$2 sm:$0xf]
    %s1237 = scalar_lea.vmem [#allocation2], 24
    %v1238 = vld [vmem:[%s1237] ss:$2 sm:$0xff]
    %s1239 = scalar_lea.vmem [#allocation2], 40
    %v1240 = vld [vmem:[%s1239] ss:$2 sm:$0xf]
    %s1241 = scalar_lea.vmem [#allocation2], 48
    %v1242 = vld [vmem:[%s1241] ss:$2 sm:$0xff]
    %s1243 = scalar_lea.vmem [#allocation2], 64
    %v1244 = vld [vmem:[%s1243] ss:$2 sm:$0xf]
    %s1245 = scalar_lea.vmem [#allocation2], 72
    %v1246 = vld [vmem:[%s1245] ss:$2 sm:$0xff]
    %s1247 = scalar_lea.vmem [#allocation2], 88
    %v1248 = vld [vmem:[%s1247] ss:$2 sm:$0xf]
    %s1249 = scalar_lea.vmem [#allocation2], 96
    %v1250 = vld [vmem:[%s1249] ss:$2 sm:$0xff]
    %s1251 = scalar_lea.vmem [#allocation2], 112
    %v1252 = vld [vmem:[%s1251] ss:$2 sm:$0xf]
    %s1253 = scalar_lea.vmem [#allocation2], 120
    %v1254 = vld [vmem:[%s1253] ss:$2 sm:$0xff]
    %s1255 = scalar_lea.vmem [#allocation2], 136
    %v1256 = vld [vmem:[%s1255] ss:$2 sm:$0xf]
    %s1257 = scalar_lea.vmem [#allocation2], 144
    %v1258 = vld [vmem:[%s1257] ss:$2 sm:$0xff]
    %s1259 = scalar_lea.vmem [#allocation2], 160
    %v1260 = vld [vmem:[%s1259] ss:$2 sm:$0xf]
    %s1261 = scalar_lea.vmem [#allocation2], 168
    %v1262 = vld [vmem:[%s1261] ss:$2 sm:$0xff]
    %s1263 = scalar_lea.vmem [#allocation2], 184
    %v1264 = vld [vmem:[%s1263] ss:$2 sm:$0xf]
    %s1265 = scalar_lea.vmem [#allocation2], 1
    %v1266 = vld [vmem:[%s1265] ss:$2 sm:$0xff]
    %s1267 = scalar_lea.vmem [#allocation2], 17
    %v1268 = vld [vmem:[%s1267] ss:$2 sm:$0xf]
    %s1269 = scalar_lea.vmem [#allocation2], 25
    %v1270 = vld [vmem:[%s1269] ss:$2 sm:$0xff]
    %s1271 = scalar_lea.vmem [#allocation2], 41
    %v1272 = vld [vmem:[%s1271] ss:$2 sm:$0xf]
    %s1273 = scalar_lea.vmem [#allocation2], 49
    %v1274 = vld [vmem:[%s1273] ss:$2 sm:$0xff]
    %s1275 = scalar_lea.vmem [#allocation2], 65
    %v1276 = vld [vmem:[%s1275] ss:$2 sm:$0xf]
    %s1277 = scalar_lea.vmem [#allocation2], 73
    %v1278 = vld [vmem:[%s1277] ss:$2 sm:$0xff]
    %s1279 = scalar_lea.vmem [#allocation2], 89
    %v1280 = vld [vmem:[%s1279] ss:$2 sm:$0xf]
    %s1281 = scalar_lea.vmem [#allocation2], 97
    %v1282 = vld [vmem:[%s1281] ss:$2 sm:$0xff]
    %s1283 = scalar_lea.vmem [#allocation2], 113
    %v1284 = vld [vmem:[%s1283] ss:$2 sm:$0xf]
    %s1285 = scalar_lea.vmem [#allocation2], 121
    %v1286 = vld [vmem:[%s1285] ss:$2 sm:$0xff]
    %s1287 = scalar_lea.vmem [#allocation2], 137
    %v1288 = vld [vmem:[%s1287] ss:$2 sm:$0xf]
    %s1289 = scalar_lea.vmem [#allocation2], 145
    %v1290 = vld [vmem:[%s1289] ss:$2 sm:$0xff]
    %s1291 = scalar_lea.vmem [#allocation2], 161
    %v1292 = vld [vmem:[%s1291] ss:$2 sm:$0xf]
    %s1293 = scalar_lea.vmem [#allocation2], 169
    %v1294 = vld [vmem:[%s1293] ss:$2 sm:$0xff]
    %s1295 = scalar_lea.vmem [#allocation2], 185
    %v1296 = vld [vmem:[%s1295] ss:$2 sm:$0xf]
    %v1297 = vmax.f32 %v1234, %v1266
    %v1298 = vmax.f32 %v1236, %v1268
    %v1299 = vmax.f32 %v1238, %v1270
    %v1300 = vmax.f32 %v1240, %v1272
    %v1301 = vmax.f32 %v1242, %v1274
    %v1302 = vmax.f32 %v1244, %v1276
    %v1303 = vmax.f32 %v1246, %v1278
    %v1304 = vmax.f32 %v1248, %v1280
    %v1305 = vmax.f32 %v1250, %v1282
    %v1306 = vmax.f32 %v1252, %v1284
    %v1307 = vmax.f32 %v1254, %v1286
    %v1308 = vmax.f32 %v1256, %v1288
    %v1309 = vmax.f32 %v1258, %v1290
    %v1310 = vmax.f32 %v1260, %v1292
    %v1311 = vmax.f32 %v1262, %v1294
    %v1312 = vmax.f32 %v1264, %v1296
    %v1313 = vld [vmem:[#allocation9] sm:$0x1]
    %v1315 = vlaneseq
    %v1316 = vshrl.u32 %v1315, 7
    %v1317 = vsub.s32 0, %v1316
    %v1318 = vrot.slane %v1313, %v1317
    %v1320 = vadd.f32 %v1297, %v1318
    %v1321 = vadd.f32 %v1298, %v1318
    %v1322 = vadd.f32 %v1299, %v1318
    %v1323 = vadd.f32 %v1300, %v1318
    %v1324 = vadd.f32 %v1301, %v1318
    %v1325 = vadd.f32 %v1302, %v1318
    %v1326 = vadd.f32 %v1303, %v1318
    %v1327 = vadd.f32 %v1304, %v1318
    %v1328 = vadd.f32 %v1305, %v1318
    %v1329 = vadd.f32 %v1306, %v1318
    %v1330 = vadd.f32 %v1307, %v1318
    %v1331 = vadd.f32 %v1308, %v1318
    %v1332 = vadd.f32 %v1309, %v1318
    %v1333 = vadd.f32 %v1310, %v1318
    %v1334 = vadd.f32 %v1311, %v1318
    %v1335 = vadd.f32 %v1312, %v1318
    %v1336 = vmax.f32 %v1320, 0.0
    %v1337 = vmax.f32 %v1321, 0.0
    %v1338 = vmax.f32 %v1322, 0.0
    %v1339 = vmax.f32 %v1323, 0.0
    %v1340 = vmax.f32 %v1324, 0.0
    %v1341 = vmax.f32 %v1325, 0.0
    %v1342 = vmax.f32 %v1326, 0.0
    %v1343 = vmax.f32 %v1327, 0.0
    %v1344 = vmax.f32 %v1328, 0.0
    %v1345 = vmax.f32 %v1329, 0.0
    %v1346 = vmax.f32 %v1330, 0.0
    %v1347 = vmax.f32 %v1331, 0.0
    %v1348 = vmax.f32 %v1332, 0.0
    %v1349 = vmax.f32 %v1333, 0.0
    %v1350 = vmax.f32 %v1334, 0.0
    %v1351 = vmax.f32 %v1335, 0.0
    %v1368 = vrot.slane %v1336, 1
    %v1369 = vrot.slane %v1337, 1
    %v1370 = vsel %vm244, %v1368, %v1369
    %v1371 = vrot.slane %v1338, 1
    %v1372 = vrot.slane %v1339, 1
    %v1373 = vsel %vm244, %v1371, %v1372
    %v1374 = vrot.slane %v1340, 1
    %v1375 = vrot.slane %v1341, 1
    %v1376 = vsel %vm244, %v1374, %v1375
    %v1377 = vrot.slane %v1342, 1
    %v1378 = vrot.slane %v1343, 1
    %v1379 = vsel %vm244, %v1377, %v1378
    %v1380 = vrot.slane %v1344, 1
    %v1381 = vrot.slane %v1345, 1
    %v1382 = vsel %vm244, %v1380, %v1381
    %v1383 = vrot.slane %v1346, 1
    %v1384 = vrot.slane %v1347, 1
    %v1385 = vsel %vm244, %v1383, %v1384
    %v1386 = vrot.slane %v1348, 1
    %v1387 = vrot.slane %v1349, 1
    %v1388 = vsel %vm244, %v1386, %v1387
    %v1389 = vrot.slane %v1350, 1
    %v1390 = vrot.slane %v1351, 1
    %v1391 = vsel %vm244, %v1389, %v1390
    %v1400 = vrot.slane %v1336, 2
    %v1401 = vrot.slane %v1337, 2
    %v1402 = vsel %vm373, %v1400, %v1401
    %v1403 = vrot.slane %v1338, 2
    %v1404 = vrot.slane %v1339, 2
    %v1405 = vsel %vm373, %v1403, %v1404
    %v1406 = vrot.slane %v1340, 2
    %v1407 = vrot.slane %v1341, 2
    %v1408 = vsel %vm373, %v1406, %v1407
    %v1409 = vrot.slane %v1342, 2
    %v1410 = vrot.slane %v1343, 2
    %v1411 = vsel %vm373, %v1409, %v1410
    %v1412 = vrot.slane %v1344, 2
    %v1413 = vrot.slane %v1345, 2
    %v1414 = vsel %vm373, %v1412, %v1413
    %v1415 = vrot.slane %v1346, 2
    %v1416 = vrot.slane %v1347, 2
    %v1417 = vsel %vm373, %v1415, %v1416
    %v1418 = vrot.slane %v1348, 2
    %v1419 = vrot.slane %v1349, 2
    %v1420 = vsel %vm373, %v1418, %v1419
    %v1421 = vrot.slane %v1350, 2
    %v1422 = vrot.slane %v1351, 2
    %v1423 = vsel %vm373, %v1421, %v1422
    %v1432 = vrot.slane %v1336, 3
    %v1433 = vrot.slane %v1337, 3
    %v1434 = vsel %vm502, %v1432, %v1433
    %v1435 = vrot.slane %v1338, 3
    %v1436 = vrot.slane %v1339, 3
    %v1437 = vsel %vm502, %v1435, %v1436
    %v1438 = vrot.slane %v1340, 3
    %v1439 = vrot.slane %v1341, 3
    %v1440 = vsel %vm502, %v1438, %v1439
    %v1441 = vrot.slane %v1342, 3
    %v1442 = vrot.slane %v1343, 3
    %v1443 = vsel %vm502, %v1441, %v1442
    %v1444 = vrot.slane %v1344, 3
    %v1445 = vrot.slane %v1345, 3
    %v1446 = vsel %vm502, %v1444, %v1445
    %v1447 = vrot.slane %v1346, 3
    %v1448 = vrot.slane %v1347, 3
    %v1449 = vsel %vm502, %v1447, %v1448
    %v1450 = vrot.slane %v1348, 3
    %v1451 = vrot.slane %v1349, 3
    %v1452 = vsel %vm502, %v1450, %v1451
    %v1453 = vrot.slane %v1350, 3
    %v1454 = vrot.slane %v1351, 3
    %v1455 = vsel %vm502, %v1453, %v1454
    %v1464 = vrot.slane %v1336, 4
    %v1465 = vrot.slane %v1337, 4
    %v1466 = vsel %vm631, %v1464, %v1465
    %v1467 = vrot.slane %v1338, 4
    %v1468 = vrot.slane %v1339, 4
    %v1469 = vsel %vm631, %v1467, %v1468
    %v1470 = vrot.slane %v1340, 4
    %v1471 = vrot.slane %v1341, 4
    %v1472 = vsel %vm631, %v1470, %v1471
    %v1473 = vrot.slane %v1342, 4
    %v1474 = vrot.slane %v1343, 4
    %v1475 = vsel %vm631, %v1473, %v1474
    %v1476 = vrot.slane %v1344, 4
    %v1477 = vrot.slane %v1345, 4
    %v1478 = vsel %vm631, %v1476, %v1477
    %v1479 = vrot.slane %v1346, 4
    %v1480 = vrot.slane %v1347, 4
    %v1481 = vsel %vm631, %v1479, %v1480
    %v1482 = vrot.slane %v1348, 4
    %v1483 = vrot.slane %v1349, 4
    %v1484 = vsel %vm631, %v1482, %v1483
    %v1485 = vrot.slane %v1350, 4
    %v1486 = vrot.slane %v1351, 4
    %v1487 = vsel %vm631, %v1485, %v1486
    %v1496 = vpack.c.bf16 %v1338, %v1336
    %v1497 = vpack.c.bf16 %v1373, %v1370
    %v1498 = vpack.c.bf16 %v1405, %v1402
    %v1499 = vpack.c.bf16 %v1437, %v1434
    %v1500 = vpack.c.bf16 %v1469, %v1466
    %v1501 = vpack.c.bf16 %v1342, %v1340
    %v1502 = vpack.c.bf16 %v1379, %v1376
    %v1503 = vpack.c.bf16 %v1411, %v1408
    %v1504 = vpack.c.bf16 %v1443, %v1440
    %v1505 = vpack.c.bf16 %v1475, %v1472
    %v1506 = vpack.c.bf16 %v1346, %v1344
    %v1507 = vpack.c.bf16 %v1385, %v1382
    %v1508 = vpack.c.bf16 %v1417, %v1414
    %v1509 = vpack.c.bf16 %v1449, %v1446
    %v1510 = vpack.c.bf16 %v1481, %v1478
    %v1511 = vpack.c.bf16 %v1350, %v1348
    %v1512 = vpack.c.bf16 %v1391, %v1388
    %v1513 = vpack.c.bf16 %v1423, %v1420
    %v1514 = vpack.c.bf16 %v1455, %v1452
    %v1515 = vpack.c.bf16 %v1487, %v1484
    %v1516 = vld [vmem:[#allocation10] sm:$0xff]
    %v1517 = vld [vmem:[#allocation10 + $0x8] sm:$0xff]
    %v1518 = vld [vmem:[#allocation10 + $0x10] sm:$0xff]
    %v1519 = vld [vmem:[#allocation10 + $0x18] sm:$0xff]
    %v1520 = vld [vmem:[#allocation10 + $0x20] sm:$0xff]
    %v1521 = vld [vmem:[#allocation10 + $0x28] sm:$0xff]
    %v1522 = vld [vmem:[#allocation10 + $0x30] sm:$0xff]
    %v1523 = vld [vmem:[#allocation10 + $0x38] sm:$0xff]
    %v1524 = vld [vmem:[#allocation10 + $0x40] sm:$0xff]
    %v1525 = vld [vmem:[#allocation10 + $0x48] sm:$0xff]
    %v1526 = vld [vmem:[#allocation10 + $0x50] sm:$0xff]
    %v1527 = vld [vmem:[#allocation10 + $0x58] sm:$0xff]
    %v1528 = vld [vmem:[#allocation10 + $0x60] sm:$0xff]
    %v1529 = vld [vmem:[#allocation10 + $0x68] sm:$0xff]
    %v1530 = vld [vmem:[#allocation10 + $0x70] sm:$0xff]
    %v1531 = vld [vmem:[#allocation10 + $0x78] sm:$0xff]
    %v1532 = vld [vmem:[#allocation10 + $0x80] sm:$0xff]
    %v1533 = vld [vmem:[#allocation10 + $0x88] sm:$0xff]
    %v1534 = vld [vmem:[#allocation10 + $0x90] sm:$0xff]
    %v1535 = vld [vmem:[#allocation10 + $0x98] sm:$0xff]
    %v1536 = vld [vmem:[#allocation10 + $0xa0] sm:$0xff]
    %v1537 = vld [vmem:[#allocation10 + $0xa8] sm:$0xff]
    %v1538 = vld [vmem:[#allocation10 + $0xb0] sm:$0xff]
    %v1539 = vld [vmem:[#allocation10 + $0xb8] sm:$0xff]
    %v1540 = vld [vmem:[#allocation10 + $0xc0] sm:$0xff]
    %v1541 = vld [vmem:[#allocation10 + $0xc8] sm:$0xff]
    %v1542 = vld [vmem:[#allocation10 + $0xd0] sm:$0xff]
    %v1543 = vld [vmem:[#allocation10 + $0xd8] sm:$0xff]
    %v1544 = vld [vmem:[#allocation10 + $0xe0] sm:$0xff]
    %v1545 = vld [vmem:[#allocation10 + $0xe8] sm:$0xff]
    %v1546 = vld [vmem:[#allocation10 + $0xf0] sm:$0xff]
    %v1547 = vld [vmem:[#allocation10 + $0xf8] sm:$0xff]
    %v1548 = vld [vmem:[#allocation10 + $0x100] sm:$0xff]
    %v1549 = vld [vmem:[#allocation10 + $0x108] sm:$0xff]
    %v1550 = vld [vmem:[#allocation10 + $0x110] sm:$0xff]
    %v1551 = vld [vmem:[#allocation10 + $0x118] sm:$0xff]
    %v1552 = vld [vmem:[#allocation10 + $0x120] sm:$0xff]
    %v1553 = vld [vmem:[#allocation10 + $0x128] sm:$0xff]
    %v1554 = vld [vmem:[#allocation10 + $0x130] sm:$0xff]
    %v1555 = vld [vmem:[#allocation10 + $0x138] sm:$0xff]
    %v1556 = vld [vmem:[#allocation10 + $0x140] sm:$0xff]
    %v1557 = vld [vmem:[#allocation10 + $0x148] sm:$0xff]
    %v1558 = vld [vmem:[#allocation10 + $0x150] sm:$0xff]
    %v1559 = vld [vmem:[#allocation10 + $0x158] sm:$0xff]
    %v1560 = vld [vmem:[#allocation10 + $0x160] sm:$0xff]
    %v1561 = vld [vmem:[#allocation10 + $0x168] sm:$0xff]
    %v1562 = vld [vmem:[#allocation10 + $0x170] sm:$0xff]
    %v1563 = vld [vmem:[#allocation10 + $0x178] sm:$0xff]
    %v1564 = vld [vmem:[#allocation10 + $0x180] sm:$0xff]
    %v1565 = vld [vmem:[#allocation10 + $0x188] sm:$0xff]
    %v1566 = vld [vmem:[#allocation10 + $0x190] sm:$0xff]
    %v1567 = vld [vmem:[#allocation10 + $0x198] sm:$0xff]
    %v1568 = vld [vmem:[#allocation10 + $0x1a0] sm:$0xff]
    %v1569 = vld [vmem:[#allocation10 + $0x1a8] sm:$0xff]
    %v1570 = vld [vmem:[#allocation10 + $0x1b0] sm:$0xff]
    %v1571 = vld [vmem:[#allocation10 + $0x1b8] sm:$0xff]
    %v1572 = vld [vmem:[#allocation10 + $0x1c0] sm:$0xff]
    %v1573 = vld [vmem:[#allocation10 + $0x1c8] sm:$0xff]
    %v1574 = vld [vmem:[#allocation10 + $0x1d0] sm:$0xff]
    %v1575 = vld [vmem:[#allocation10 + $0x1d8] sm:$0xff]
    %v1576 = vld [vmem:[#allocation10 + $0x1e0] sm:$0xff]
    %v1577 = vld [vmem:[#allocation10 + $0x1e8] sm:$0xff]
    %v1578 = vld [vmem:[#allocation10 + $0x1f0] sm:$0xff]
    %v1579 = vld [vmem:[#allocation10 + $0x1f8] sm:$0xff]
    %v1580 = vld [vmem:[#allocation10 + $0x200] sm:$0xff]
    %v1581 = vld [vmem:[#allocation10 + $0x208] sm:$0xff]
    %v1582 = vld [vmem:[#allocation10 + $0x210] sm:$0xff]
    %v1583 = vld [vmem:[#allocation10 + $0x218] sm:$0xff]
    %v1584 = vld [vmem:[#allocation10 + $0x220] sm:$0xff]
    %v1585 = vld [vmem:[#allocation10 + $0x228] sm:$0xff]
    %v1586 = vld [vmem:[#allocation10 + $0x230] sm:$0xff]
    %v1587 = vld [vmem:[#allocation10 + $0x238] sm:$0xff]
    %v1588 = vld [vmem:[#allocation10 + $0x240] sm:$0xff]
    %v1589 = vld [vmem:[#allocation10 + $0x248] sm:$0xff]
    %v1590 = vld [vmem:[#allocation10 + $0x250] sm:$0xff]
    %v1591 = vld [vmem:[#allocation10 + $0x258] sm:$0xff]
    %v1592 = vld [vmem:[#allocation10 + $0x260] sm:$0xff]
    %v1593 = vld [vmem:[#allocation10 + $0x268] sm:$0xff]
    %v1594 = vld [vmem:[#allocation10 + $0x270] sm:$0xff]
    %v1595 = vld [vmem:[#allocation10 + $0x278] sm:$0xff]
    %v1676 = vunpack.c.l.b16 %v1516
    %v1677 = vunpack.c.h.b16 %v1516
    %v1678 = vunpack.c.l.b16 %v1517
    %v1679 = vunpack.c.h.b16 %v1517
    %v1680 = vunpack.c.l.b16 %v1518
    %v1681 = vunpack.c.h.b16 %v1518
    %v1682 = vunpack.c.l.b16 %v1519
    %v1683 = vunpack.c.h.b16 %v1519
    %v1684 = vunpack.c.l.b16 %v1520
    %v1685 = vunpack.c.h.b16 %v1520
    %v1686 = vunpack.c.l.b16 %v1521
    %v1687 = vunpack.c.h.b16 %v1521
    %v1688 = vunpack.c.l.b16 %v1522
    %v1689 = vunpack.c.h.b16 %v1522
    %v1690 = vunpack.c.l.b16 %v1523
    %v1691 = vunpack.c.h.b16 %v1523
    %v1692 = vunpack.c.l.b16 %v1524
    %v1693 = vunpack.c.h.b16 %v1524
    %v1694 = vunpack.c.l.b16 %v1525
    %v1695 = vunpack.c.h.b16 %v1525
    %v1696 = vunpack.c.l.b16 %v1526
    %v1697 = vunpack.c.h.b16 %v1526
    %v1698 = vunpack.c.l.b16 %v1527
    %v1699 = vunpack.c.h.b16 %v1527
    %v1700 = vunpack.c.l.b16 %v1528
    %v1701 = vunpack.c.h.b16 %v1528
    %v1702 = vunpack.c.l.b16 %v1529
    %v1703 = vunpack.c.h.b16 %v1529
    %v1704 = vunpack.c.l.b16 %v1530
    %v1705 = vunpack.c.h.b16 %v1530
    %v1706 = vunpack.c.l.b16 %v1531
    %v1707 = vunpack.c.h.b16 %v1531
    %v1708 = vunpack.c.l.b16 %v1532
    %v1709 = vunpack.c.h.b16 %v1532
    %v1710 = vunpack.c.l.b16 %v1533
    %v1711 = vunpack.c.h.b16 %v1533
    %v1712 = vunpack.c.l.b16 %v1534
    %v1713 = vunpack.c.h.b16 %v1534
    %v1714 = vunpack.c.l.b16 %v1535
    %v1715 = vunpack.c.h.b16 %v1535
    %v1716 = vunpack.c.l.b16 %v1536
    %v1717 = vunpack.c.h.b16 %v1536
    %v1718 = vunpack.c.l.b16 %v1537
    %v1719 = vunpack.c.h.b16 %v1537
    %v1720 = vunpack.c.l.b16 %v1538
    %v1721 = vunpack.c.h.b16 %v1538
    %v1722 = vunpack.c.l.b16 %v1539
    %v1723 = vunpack.c.h.b16 %v1539
    %v1724 = vunpack.c.l.b16 %v1540
    %v1725 = vunpack.c.h.b16 %v1540
    %v1726 = vunpack.c.l.b16 %v1541
    %v1727 = vunpack.c.h.b16 %v1541
    %v1728 = vunpack.c.l.b16 %v1542
    %v1729 = vunpack.c.h.b16 %v1542
    %v1730 = vunpack.c.l.b16 %v1543
    %v1731 = vunpack.c.h.b16 %v1543
    %v1732 = vunpack.c.l.b16 %v1544
    %v1733 = vunpack.c.h.b16 %v1544
    %v1734 = vunpack.c.l.b16 %v1545
    %v1735 = vunpack.c.h.b16 %v1545
    %v1736 = vunpack.c.l.b16 %v1546
    %v1737 = vunpack.c.h.b16 %v1546
    %v1738 = vunpack.c.l.b16 %v1547
    %v1739 = vunpack.c.h.b16 %v1547
    %v1740 = vunpack.c.l.b16 %v1548
    %v1741 = vunpack.c.h.b16 %v1548
    %v1742 = vunpack.c.l.b16 %v1549
    %v1743 = vunpack.c.h.b16 %v1549
    %v1744 = vunpack.c.l.b16 %v1550
    %v1745 = vunpack.c.h.b16 %v1550
    %v1746 = vunpack.c.l.b16 %v1551
    %v1747 = vunpack.c.h.b16 %v1551
    %v1748 = vunpack.c.l.b16 %v1552
    %v1749 = vunpack.c.h.b16 %v1552
    %v1750 = vunpack.c.l.b16 %v1553
    %v1751 = vunpack.c.h.b16 %v1553
    %v1752 = vunpack.c.l.b16 %v1554
    %v1753 = vunpack.c.h.b16 %v1554
    %v1754 = vunpack.c.l.b16 %v1555
    %v1755 = vunpack.c.h.b16 %v1555
    %v1756 = vunpack.c.l.b16 %v1556
    %v1757 = vunpack.c.h.b16 %v1556
    %v1758 = vunpack.c.l.b16 %v1557
    %v1759 = vunpack.c.h.b16 %v1557
    %v1760 = vunpack.c.l.b16 %v1558
    %v1761 = vunpack.c.h.b16 %v1558
    %v1762 = vunpack.c.l.b16 %v1559
    %v1763 = vunpack.c.h.b16 %v1559
    %v1764 = vunpack.c.l.b16 %v1560
    %v1765 = vunpack.c.h.b16 %v1560
    %v1766 = vunpack.c.l.b16 %v1561
    %v1767 = vunpack.c.h.b16 %v1561
    %v1768 = vunpack.c.l.b16 %v1562
    %v1769 = vunpack.c.h.b16 %v1562
    %v1770 = vunpack.c.l.b16 %v1563
    %v1771 = vunpack.c.h.b16 %v1563
    %v1772 = vunpack.c.l.b16 %v1564
    %v1773 = vunpack.c.h.b16 %v1564
    %v1774 = vunpack.c.l.b16 %v1565
    %v1775 = vunpack.c.h.b16 %v1565
    %v1776 = vunpack.c.l.b16 %v1566
    %v1777 = vunpack.c.h.b16 %v1566
    %v1778 = vunpack.c.l.b16 %v1567
    %v1779 = vunpack.c.h.b16 %v1567
    %v1780 = vunpack.c.l.b16 %v1568
    %v1781 = vunpack.c.h.b16 %v1568
    %v1782 = vunpack.c.l.b16 %v1569
    %v1783 = vunpack.c.h.b16 %v1569
    %v1784 = vunpack.c.l.b16 %v1570
    %v1785 = vunpack.c.h.b16 %v1570
    %v1786 = vunpack.c.l.b16 %v1571
    %v1787 = vunpack.c.h.b16 %v1571
    %v1788 = vunpack.c.l.b16 %v1572
    %v1789 = vunpack.c.h.b16 %v1572
    %v1790 = vunpack.c.l.b16 %v1573
    %v1791 = vunpack.c.h.b16 %v1573
    %v1792 = vunpack.c.l.b16 %v1574
    %v1793 = vunpack.c.h.b16 %v1574
    %v1794 = vunpack.c.l.b16 %v1575
    %v1795 = vunpack.c.h.b16 %v1575
    %v1796 = vunpack.c.l.b16 %v1576
    %v1797 = vunpack.c.h.b16 %v1576
    %v1798 = vunpack.c.l.b16 %v1577
    %v1799 = vunpack.c.h.b16 %v1577
    %v1800 = vunpack.c.l.b16 %v1578
    %v1801 = vunpack.c.h.b16 %v1578
    %v1802 = vunpack.c.l.b16 %v1579
    %v1803 = vunpack.c.h.b16 %v1579
    %v1804 = vunpack.c.l.b16 %v1580
    %v1805 = vunpack.c.h.b16 %v1580
    %v1806 = vunpack.c.l.b16 %v1581
    %v1807 = vunpack.c.h.b16 %v1581
    %v1808 = vunpack.c.l.b16 %v1582
    %v1809 = vunpack.c.h.b16 %v1582
    %v1810 = vunpack.c.l.b16 %v1583
    %v1811 = vunpack.c.h.b16 %v1583
    %v1812 = vunpack.c.l.b16 %v1584
    %v1813 = vunpack.c.h.b16 %v1584
    %v1814 = vunpack.c.l.b16 %v1585
    %v1815 = vunpack.c.h.b16 %v1585
    %v1816 = vunpack.c.l.b16 %v1586
    %v1817 = vunpack.c.h.b16 %v1586
    %v1818 = vunpack.c.l.b16 %v1587
    %v1819 = vunpack.c.h.b16 %v1587
    %v1820 = vunpack.c.l.b16 %v1588
    %v1821 = vunpack.c.h.b16 %v1588
    %v1822 = vunpack.c.l.b16 %v1589
    %v1823 = vunpack.c.h.b16 %v1589
    %v1824 = vunpack.c.l.b16 %v1590
    %v1825 = vunpack.c.h.b16 %v1590
    %v1826 = vunpack.c.l.b16 %v1591
    %v1827 = vunpack.c.h.b16 %v1591
    %v1828 = vunpack.c.l.b16 %v1592
    %v1829 = vunpack.c.h.b16 %v1592
    %v1830 = vunpack.c.l.b16 %v1593
    %v1831 = vunpack.c.h.b16 %v1593
    %v1832 = vunpack.c.l.b16 %v1594
    %v1833 = vunpack.c.h.b16 %v1594
    %v1834 = vunpack.c.l.b16 %v1595
    %v1835 = vunpack.c.h.b16 %v1595
    %v1836 = vpack.c.b16 %v1678, %v1676
    %v1837 = vpack.c.b16 %v1679, %v1677
    %v1838 = vpack.c.b16 %v1682, %v1680
    %v1839 = vpack.c.b16 %v1683, %v1681
    %v1840 = vpack.c.b16 %v1686, %v1684
    %v1841 = vpack.c.b16 %v1687, %v1685
    %v1842 = vpack.c.b16 %v1690, %v1688
    %v1843 = vpack.c.b16 %v1691, %v1689
    %v1844 = vpack.c.b16 %v1694, %v1692
    %v1845 = vpack.c.b16 %v1695, %v1693
    %v1846 = vpack.c.b16 %v1698, %v1696
    %v1847 = vpack.c.b16 %v1699, %v1697
    %v1848 = vpack.c.b16 %v1702, %v1700
    %v1849 = vpack.c.b16 %v1703, %v1701
    %v1850 = vpack.c.b16 %v1706, %v1704
    %v1851 = vpack.c.b16 %v1707, %v1705
    %v1852 = vpack.c.b16 %v1710, %v1708
    %v1853 = vpack.c.b16 %v1711, %v1709
    %v1854 = vpack.c.b16 %v1714, %v1712
    %v1855 = vpack.c.b16 %v1715, %v1713
    %v1856 = vpack.c.b16 %v1718, %v1716
    %v1857 = vpack.c.b16 %v1719, %v1717
    %v1858 = vpack.c.b16 %v1722, %v1720
    %v1859 = vpack.c.b16 %v1723, %v1721
    %v1860 = vpack.c.b16 %v1726, %v1724
    %v1861 = vpack.c.b16 %v1727, %v1725
    %v1862 = vpack.c.b16 %v1730, %v1728
    %v1863 = vpack.c.b16 %v1731, %v1729
    %v1864 = vpack.c.b16 %v1734, %v1732
    %v1865 = vpack.c.b16 %v1735, %v1733
    %v1866 = vpack.c.b16 %v1738, %v1736
    %v1867 = vpack.c.b16 %v1739, %v1737
    %v1868 = vpack.c.b16 %v1742, %v1740
    %v1869 = vpack.c.b16 %v1743, %v1741
    %v1870 = vpack.c.b16 %v1746, %v1744
    %v1871 = vpack.c.b16 %v1747, %v1745
    %v1872 = vpack.c.b16 %v1750, %v1748
    %v1873 = vpack.c.b16 %v1751, %v1749
    %v1874 = vpack.c.b16 %v1754, %v1752
    %v1875 = vpack.c.b16 %v1755, %v1753
    %v1876 = vpack.c.b16 %v1758, %v1756
    %v1877 = vpack.c.b16 %v1759, %v1757
    %v1878 = vpack.c.b16 %v1762, %v1760
    %v1879 = vpack.c.b16 %v1763, %v1761
    %v1880 = vpack.c.b16 %v1766, %v1764
    %v1881 = vpack.c.b16 %v1767, %v1765
    %v1882 = vpack.c.b16 %v1770, %v1768
    %v1883 = vpack.c.b16 %v1771, %v1769
    %v1884 = vpack.c.b16 %v1774, %v1772
    %v1885 = vpack.c.b16 %v1775, %v1773
    %v1886 = vpack.c.b16 %v1778, %v1776
    %v1887 = vpack.c.b16 %v1779, %v1777
    %v1888 = vpack.c.b16 %v1782, %v1780
    %v1889 = vpack.c.b16 %v1783, %v1781
    %v1890 = vpack.c.b16 %v1786, %v1784
    %v1891 = vpack.c.b16 %v1787, %v1785
    %v1892 = vpack.c.b16 %v1790, %v1788
    %v1893 = vpack.c.b16 %v1791, %v1789
    %v1894 = vpack.c.b16 %v1794, %v1792
    %v1895 = vpack.c.b16 %v1795, %v1793
    %v1896 = vpack.c.b16 %v1798, %v1796
    %v1897 = vpack.c.b16 %v1799, %v1797
    %v1898 = vpack.c.b16 %v1802, %v1800
    %v1899 = vpack.c.b16 %v1803, %v1801
    %v1900 = vpack.c.b16 %v1806, %v1804
    %v1901 = vpack.c.b16 %v1807, %v1805
    %v1902 = vpack.c.b16 %v1810, %v1808
    %v1903 = vpack.c.b16 %v1811, %v1809
    %v1904 = vpack.c.b16 %v1814, %v1812
    %v1905 = vpack.c.b16 %v1815, %v1813
    %v1906 = vpack.c.b16 %v1818, %v1816
    %v1907 = vpack.c.b16 %v1819, %v1817
    %v1908 = vpack.c.b16 %v1822, %v1820
    %v1909 = vpack.c.b16 %v1823, %v1821
    %v1910 = vpack.c.b16 %v1826, %v1824
    %v1911 = vpack.c.b16 %v1827, %v1825
    %v1912 = vpack.c.b16 %v1830, %v1828
    %v1913 = vpack.c.b16 %v1831, %v1829
    %v1914 = vpack.c.b16 %v1834, %v1832
    %v1915 = vpack.c.b16 %v1835, %v1833
    %1996 = vmatprep.subr.bf16.mxu0 %v1851
    %1997 = vmatpush1.bf16.msra.mxu0 %v1850
    %1998 = vmatprep.subr.bf16.mxu0 %v1849
    %1999 = vmatpush1.bf16.msra.mxu0 %v1848
    %2000 = vmatprep.subr.bf16.mxu0 %v1847
    %2001 = vmatpush1.bf16.msra.mxu0 %v1846
    %2002 = vmatprep.subr.bf16.mxu0 %v1845
    %2003 = vmatpush1.bf16.msra.mxu0 %v1844
    %2004 = vmatprep.subr.bf16.mxu0 %v1843
    %2005 = vmatpush1.bf16.msra.mxu0 %v1842
    %2006 = vmatprep.subr.bf16.mxu0 %v1841
    %2007 = vmatpush1.bf16.msra.mxu0 %v1840
    %2008 = vmatprep.subr.bf16.mxu0 %v1839
    %2009 = vmatpush1.bf16.msra.mxu0 %v1838
    %2010 = vmatprep.subr.bf16.mxu0 %v1837
    %2011 = vmatpush1.bf16.msra.mxu0 %v1836
    %2012 = vmatprep.subr.bf16.mxu0 %v1867
    %2013 = vmatpush2.bf16.msra.mxu0 %v1866
    %2014 = vmatprep.subr.bf16.mxu0 %v1865
    %2015 = vmatpush2.bf16.msra.mxu0 %v1864
    %2016 = vmatprep.subr.bf16.mxu0 %v1863
    %2017 = vmatpush2.bf16.msra.mxu0 %v1862
    %2018 = vmatprep.subr.bf16.mxu0 %v1861
    %2019 = vmatpush2.bf16.msra.mxu0 %v1860
    %2020 = vmatprep.subr.bf16.mxu0 %v1859
    %2021 = vmatpush2.bf16.msra.mxu0 %v1858
    %2022 = vmatprep.subr.bf16.mxu0 %v1857
    %2023 = vmatpush2.bf16.msra.mxu0 %v1856
    %2024 = vmatprep.subr.bf16.mxu0 %v1855
    %2025 = vmatpush2.bf16.msra.mxu0 %v1854
    %2026 = vmatprep.subr.bf16.mxu0 %v1853
    %2027 = vmatpush2.bf16.msra.mxu0 %v1852
    %2028 = vmatprep.mubr.bf16.mxu0 %v1497
    %2029 = vmatmul.mubr.bf16.gmra.mxu0 %v1496
    %v2030 = vpop.f32.mrf.mxu0
    %v2031 = vadd.f32 0.0, %v2030
    %v2032 = vpop.f32.mrf.mxu0
    %v2033 = vadd.f32 0.0, %v2032
    %v2034 = vpop.f32.mrf.mxu0
    %v2035 = vadd.f32 0.0, %v2034
    %v2036 = vpop.f32.mrf.mxu0
    %v2037 = vadd.f32 0.0, %v2036
    %2038 = vmatprep.mubr.bf16.mxu0 %v1502
    %2039 = vmatmul.mubr.bf16.gmra.mxu0 %v1501
    %v2040 = vpop.f32.mrf.mxu0
    %v2041 = vadd.f32 0.0, %v2040
    %v2042 = vpop.f32.mrf.mxu0
    %v2043 = vadd.f32 0.0, %v2042
    %v2044 = vpop.f32.mrf.mxu0
    %v2045 = vadd.f32 0.0, %v2044
    %v2046 = vpop.f32.mrf.mxu0
    %v2047 = vadd.f32 0.0, %v2046
    %2048 = vmatprep.mubr.bf16.mxu0 %v1507
    %2049 = vmatmul.mubr.bf16.gmra.mxu0 %v1506
    %v2050 = vpop.f32.mrf.mxu0
    %v2051 = vadd.f32 0.0, %v2050
    %v2052 = vpop.f32.mrf.mxu0
    %v2053 = vadd.f32 0.0, %v2052
    %v2054 = vpop.f32.mrf.mxu0
    %v2055 = vadd.f32 0.0, %v2054
    %v2056 = vpop.f32.mrf.mxu0
    %v2057 = vadd.f32 0.0, %v2056
    %2058 = vmatprep.mubr.bf16.mxu0 %v1512
    %2059 = vmatmul.mubr.bf16.gmra.mxu0 %v1511
    %v2060 = vpop.f32.mrf.mxu0
    %v2061 = vadd.f32 0.0, %v2060
    %v2062 = vpop.f32.mrf.mxu0
    %v2063 = vadd.f32 0.0, %v2062
    %v2064 = vpop.f32.mrf.mxu0
    %v2065 = vadd.f32 0.0, %v2064
    %v2066 = vpop.f32.mrf.mxu0
    %v2067 = vadd.f32 0.0, %v2066
    %2068 = vdwg.mxu0
    %2069 = vmatprep.subr.bf16.mxu0 %v1883
    %2070 = vmatpush1.bf16.msra.mxu0 %v1882
    %2071 = vmatprep.subr.bf16.mxu0 %v1881
    %2072 = vmatpush1.bf16.msra.mxu0 %v1880
    %2073 = vmatprep.subr.bf16.mxu0 %v1879
    %2074 = vmatpush1.bf16.msra.mxu0 %v1878
    %2075 = vmatprep.subr.bf16.mxu0 %v1877
    %2076 = vmatpush1.bf16.msra.mxu0 %v1876
    %2077 = vmatprep.subr.bf16.mxu0 %v1875
    %2078 = vmatpush1.bf16.msra.mxu0 %v1874
    %2079 = vmatprep.subr.bf16.mxu0 %v1873
    %2080 = vmatpush1.bf16.msra.mxu0 %v1872
    %2081 = vmatprep.subr.bf16.mxu0 %v1871
    %2082 = vmatpush1.bf16.msra.mxu0 %v1870
    %2083 = vmatprep.subr.bf16.mxu0 %v1869
    %2084 = vmatpush1.bf16.msra.mxu0 %v1868
    %2085 = vmatprep.subr.bf16.mxu0 %v1899
    %2086 = vmatpush2.bf16.msra.mxu0 %v1898
    %2087 = vmatprep.subr.bf16.mxu0 %v1897
    %2088 = vmatpush2.bf16.msra.mxu0 %v1896
    %2089 = vmatprep.subr.bf16.mxu0 %v1895
    %2090 = vmatpush2.bf16.msra.mxu0 %v1894
    %2091 = vmatprep.subr.bf16.mxu0 %v1893
    %2092 = vmatpush2.bf16.msra.mxu0 %v1892
    %2093 = vmatprep.subr.bf16.mxu0 %v1891
    %2094 = vmatpush2.bf16.msra.mxu0 %v1890
    %2095 = vmatprep.subr.bf16.mxu0 %v1889
    %2096 = vmatpush2.bf16.msra.mxu0 %v1888
    %2097 = vmatprep.subr.bf16.mxu0 %v1887
    %2098 = vmatpush2.bf16.msra.mxu0 %v1886
    %2099 = vmatprep.subr.bf16.mxu0 %v1885
    %2100 = vmatpush2.bf16.msra.mxu0 %v1884
    %2101 = vmatprep.mubr.bf16.mxu0 %v1499
    %2102 = vmatmul.mubr.bf16.gmra.mxu0 %v1498
    %v2103 = vpop.f32.mrf.mxu0
    %v2104 = vadd.f32 %v2031, %v2103
    %v2105 = vpop.f32.mrf.mxu0
    %v2106 = vadd.f32 %v2033, %v2105
    %v2107 = vpop.f32.mrf.mxu0
    %v2108 = vadd.f32 %v2035, %v2107
    %v2109 = vpop.f32.mrf.mxu0
    %v2110 = vadd.f32 %v2037, %v2109
    %2111 = vmatprep.mubr.bf16.mxu0 %v1504
    %2112 = vmatmul.mubr.bf16.gmra.mxu0 %v1503
    %v2113 = vpop.f32.mrf.mxu0
    %v2114 = vadd.f32 %v2041, %v2113
    %v2115 = vpop.f32.mrf.mxu0
    %v2116 = vadd.f32 %v2043, %v2115
    %v2117 = vpop.f32.mrf.mxu0
    %v2118 = vadd.f32 %v2045, %v2117
    %v2119 = vpop.f32.mrf.mxu0
    %v2120 = vadd.f32 %v2047, %v2119
    %2121 = vmatprep.mubr.bf16.mxu0 %v1509
    %2122 = vmatmul.mubr.bf16.gmra.mxu0 %v1508
    %v2123 = vpop.f32.mrf.mxu0
    %v2124 = vadd.f32 %v2051, %v2123
    %v2125 = vpop.f32.mrf.mxu0
    %v2126 = vadd.f32 %v2053, %v2125
    %v2127 = vpop.f32.mrf.mxu0
    %v2128 = vadd.f32 %v2055, %v2127
    %v2129 = vpop.f32.mrf.mxu0
    %v2130 = vadd.f32 %v2057, %v2129
    %2131 = vmatprep.mubr.bf16.mxu0 %v1514
    %2132 = vmatmul.mubr.bf16.gmra.mxu0 %v1513
    %v2133 = vpop.f32.mrf.mxu0
    %v2134 = vadd.f32 %v2061, %v2133
    %v2135 = vpop.f32.mrf.mxu0
    %v2136 = vadd.f32 %v2063, %v2135
    %v2137 = vpop.f32.mrf.mxu0
    %v2138 = vadd.f32 %v2065, %v2137
    %v2139 = vpop.f32.mrf.mxu0
    %v2140 = vadd.f32 %v2067, %v2139
    %2141 = vdwg.mxu0
    %2142 = vmatprep.subr.bf16.mxu0 %v1915
    %2143 = vmatpush1.bf16.msra.mxu0 %v1914
    %2144 = vmatprep.subr.bf16.mxu0 %v1913
    %2145 = vmatpush1.bf16.msra.mxu0 %v1912
    %2146 = vmatprep.subr.bf16.mxu0 %v1911
    %2147 = vmatpush1.bf16.msra.mxu0 %v1910
    %2148 = vmatprep.subr.bf16.mxu0 %v1909
    %2149 = vmatpush1.bf16.msra.mxu0 %v1908
    %2150 = vmatprep.subr.bf16.mxu0 %v1907
    %2151 = vmatpush1.bf16.msra.mxu0 %v1906
    %2152 = vmatprep.subr.bf16.mxu0 %v1905
    %2153 = vmatpush1.bf16.msra.mxu0 %v1904
    %2154 = vmatprep.subr.bf16.mxu0 %v1903
    %2155 = vmatpush1.bf16.msra.mxu0 %v1902
    %2156 = vmatprep.subr.bf16.mxu0 %v1901
    %2157 = vmatpush1.bf16.msra.mxu0 %v1900
    %2158 = vmatprep.subr.bf16.mxu0 0
    %2159 = vmatpush2.bf16.msra.mxu0 0
    %2160 = vmatprep.subr.bf16.mxu0 0
    %2161 = vmatpush2.bf16.msra.mxu0 0
    %2162 = vmatprep.subr.bf16.mxu0 0
    %2163 = vmatpush2.bf16.msra.mxu0 0
    %2164 = vmatprep.subr.bf16.mxu0 0
    %2165 = vmatpush2.bf16.msra.mxu0 0
    %2166 = vmatprep.subr.bf16.mxu0 0
    %2167 = vmatpush2.bf16.msra.mxu0 0
    %2168 = vmatprep.subr.bf16.mxu0 0
    %2169 = vmatpush2.bf16.msra.mxu0 0
    %2170 = vmatprep.subr.bf16.mxu0 0
    %2171 = vmatpush2.bf16.msra.mxu0 0
    %2172 = vmatprep.subr.bf16.mxu0 0
    %2173 = vmatpush2.bf16.msra.mxu0 0
    %2174 = vmatprep.mubr.bf16.mxu0 0
    %2175 = vmatmul.mubr.bf16.gmra.mxu0 %v1500
    %v2176 = vpop.f32.mrf.mxu0
    %v2177 = vadd.f32 %v2104, %v2176
    %v2178 = vpop.f32.mrf.mxu0
    %v2179 = vadd.f32 %v2106, %v2178
    %v2180 = vpop.f32.mrf.mxu0
    %v2181 = vadd.f32 %v2108, %v2180
    %v2182 = vpop.f32.mrf.mxu0
    %v2183 = vadd.f32 %v2110, %v2182
    %2184 = vmatprep.mubr.bf16.mxu0 0
    %2185 = vmatmul.mubr.bf16.gmra.mxu0 %v1505
    %v2186 = vpop.f32.mrf.mxu0
    %v2187 = vadd.f32 %v2114, %v2186
    %v2188 = vpop.f32.mrf.mxu0
    %v2189 = vadd.f32 %v2116, %v2188
    %v2190 = vpop.f32.mrf.mxu0
    %v2191 = vadd.f32 %v2118, %v2190
    %v2192 = vpop.f32.mrf.mxu0
    %v2193 = vadd.f32 %v2120, %v2192
    %2194 = vmatprep.mubr.bf16.mxu0 0
    %2195 = vmatmul.mubr.bf16.gmra.mxu0 %v1510
    %v2196 = vpop.f32.mrf.mxu0
    %v2197 = vadd.f32 %v2124, %v2196
    %v2198 = vpop.f32.mrf.mxu0
    %v2199 = vadd.f32 %v2126, %v2198
    %v2200 = vpop.f32.mrf.mxu0
    %v2201 = vadd.f32 %v2128, %v2200
    %v2202 = vpop.f32.mrf.mxu0
    %v2203 = vadd.f32 %v2130, %v2202
    %2204 = vmatprep.mubr.bf16.mxu0 0
    %2205 = vmatmul.mubr.bf16.gmra.mxu0 %v1515
    %v2206 = vpop.f32.mrf.mxu0
    %v2207 = vadd.f32 %v2134, %v2206
    %v2208 = vpop.f32.mrf.mxu0
    %v2209 = vadd.f32 %v2136, %v2208
    %v2210 = vpop.f32.mrf.mxu0
    %v2211 = vadd.f32 %v2138, %v2210
    %v2212 = vpop.f32.mrf.mxu0
    %v2213 = vadd.f32 %v2140, %v2212
    %2214 = vdwg.mxu0
    %v2215 = vmax.f32 %v2177, %v2179
    %v2216 = vmax.f32 %v2181, %v2183
    %v2217 = vmax.f32 %v2187, %v2189
    %v2218 = vmax.f32 %v2191, %v2193
    %v2219 = vmax.f32 %v2197, %v2199
    %v2220 = vmax.f32 %v2201, %v2203
    %v2221 = vmax.f32 %v2207, %v2209
    %v2222 = vmax.f32 %v2211, %v2213
    %2223 = vst [vmem:[#allocation3] sm:$0xff] %v2215
    %2224 = vst [vmem:[#allocation3 + $0x8] sm:$0xff] %v2216
    %2225 = vst [vmem:[#allocation3 + $0x10] sm:$0xff] %v2217
    %2226 = vst [vmem:[#allocation3 + $0x18] sm:$0xff] %v2218
    %2227 = vst [vmem:[#allocation3 + $0x20] sm:$0xff] %v2219
    %2228 = vst [vmem:[#allocation3 + $0x28] sm:$0xff] %v2220
    %2229 = vst [vmem:[#allocation3 + $0x30] sm:$0xff] %v2221
    %2230 = vst [vmem:[#allocation3 + $0x38] sm:$0xff] %v2222
    %v2231 = vld [vmem:[#allocation3] ss:$2 sm:$0xf]
    %s2232 = scalar_lea.vmem [#allocation3], 8
    %v2233 = vld [vmem:[%s2232] ss:$2 sm:$0xf]
    %s2234 = scalar_lea.vmem [#allocation3], 16
    %v2235 = vld [vmem:[%s2234] ss:$2 sm:$0xf]
    %s2236 = scalar_lea.vmem [#allocation3], 24
    %v2237 = vld [vmem:[%s2236] ss:$2 sm:$0xf]
    %s2238 = scalar_lea.vmem [#allocation3], 32
    %v2239 = vld [vmem:[%s2238] ss:$2 sm:$0xf]
    %s2240 = scalar_lea.vmem [#allocation3], 40
    %v2241 = vld [vmem:[%s2240] ss:$2 sm:$0xf]
    %s2242 = scalar_lea.vmem [#allocation3], 48
    %v2243 = vld [vmem:[%s2242] ss:$2 sm:$0xf]
    %s2244 = scalar_lea.vmem [#allocation3], 56
    %v2245 = vld [vmem:[%s2244] ss:$2 sm:$0xf]
    %s2246 = scalar_lea.vmem [#allocation3], 1
    %v2247 = vld [vmem:[%s2246] ss:$2 sm:$0xf]
    %s2248 = scalar_lea.vmem [#allocation3], 9
    %v2249 = vld [vmem:[%s2248] ss:$2 sm:$0xf]
    %s2250 = scalar_lea.vmem [#allocation3], 17
    %v2251 = vld [vmem:[%s2250] ss:$2 sm:$0xf]
    %s2252 = scalar_lea.vmem [#allocation3], 25
    %v2253 = vld [vmem:[%s2252] ss:$2 sm:$0xf]
    %s2254 = scalar_lea.vmem [#allocation3], 33
    %v2255 = vld [vmem:[%s2254] ss:$2 sm:$0xf]
    %s2256 = scalar_lea.vmem [#allocation3], 41
    %v2257 = vld [vmem:[%s2256] ss:$2 sm:$0xf]
    %s2258 = scalar_lea.vmem [#allocation3], 49
    %v2259 = vld [vmem:[%s2258] ss:$2 sm:$0xf]
    %s2260 = scalar_lea.vmem [#allocation3], 57
    %v2261 = vld [vmem:[%s2260] ss:$2 sm:$0xf]
    %v2262 = vmax.f32 %v2231, %v2247
    %v2263 = vmax.f32 %v2233, %v2249
    %v2264 = vmax.f32 %v2235, %v2251
    %v2265 = vmax.f32 %v2237, %v2253
    %v2266 = vmax.f32 %v2239, %v2255
    %v2267 = vmax.f32 %v2241, %v2257
    %v2268 = vmax.f32 %v2243, %v2259
    %v2269 = vmax.f32 %v2245, %v2261
    %v2270 = vld [vmem:[#allocation12] sm:$0x1]
    %v2272 = vlaneseq
    %v2273 = vshrl.u32 %v2272, 7
    %v2274 = vsub.s32 0, %v2273
    %v2275 = vrot.slane %v2270, %v2274
    %v2277 = vadd.f32 %v2262, %v2275
    %v2278 = vadd.f32 %v2263, %v2275
    %v2279 = vadd.f32 %v2264, %v2275
    %v2280 = vadd.f32 %v2265, %v2275
    %v2281 = vadd.f32 %v2266, %v2275
    %v2282 = vadd.f32 %v2267, %v2275
    %v2283 = vadd.f32 %v2268, %v2275
    %v2284 = vadd.f32 %v2269, %v2275
    %v2285 = vmax.f32 %v2277, 0.0
    %v2286 = vmax.f32 %v2278, 0.0
    %v2287 = vmax.f32 %v2279, 0.0
    %v2288 = vmax.f32 %v2280, 0.0
    %v2289 = vmax.f32 %v2281, 0.0
    %v2290 = vmax.f32 %v2282, 0.0
    %v2291 = vmax.f32 %v2283, 0.0
    %v2292 = vmax.f32 %v2284, 0.0
    %v2293 = vpack.c.bf16 %v2285, %v2285
    %v2294 = vpack.c.bf16 %v2286, %v2286
    %v2295 = vpack.c.bf16 %v2287, %v2287
    %v2296 = vpack.c.bf16 %v2288, %v2288
    %v2297 = vpack.c.bf16 %v2289, %v2289
    %v2298 = vpack.c.bf16 %v2290, %v2290
    %v2299 = vpack.c.bf16 %v2291, %v2291
    %v2300 = vpack.c.bf16 %v2292, %v2292
    %v2301 = vld [vmem:[#allocation13] sm:$0xf]
    %v2302 = vld [vmem:[#allocation13 + $0x4] sm:$0xf]
    %v2303 = vld [vmem:[#allocation13 + $0x8] sm:$0xf]
    %v2304 = vld [vmem:[#allocation13 + $0xc] sm:$0xf]
    %v2305 = vld [vmem:[#allocation13 + $0x10] sm:$0xf]
    %v2306 = vld [vmem:[#allocation13 + $0x14] sm:$0xf]
    %v2307 = vld [vmem:[#allocation13 + $0x18] sm:$0xf]
    %v2308 = vld [vmem:[#allocation13 + $0x1c] sm:$0xf]
    %v2309 = vld [vmem:[#allocation13 + $0x20] sm:$0xf]
    %v2310 = vld [vmem:[#allocation13 + $0x24] sm:$0xf]
    %v2311 = vld [vmem:[#allocation13 + $0x28] sm:$0xf]
    %v2312 = vld [vmem:[#allocation13 + $0x2c] sm:$0xf]
    %v2313 = vld [vmem:[#allocation13 + $0x30] sm:$0xf]
    %v2314 = vld [vmem:[#allocation13 + $0x34] sm:$0xf]
    %v2315 = vld [vmem:[#allocation13 + $0x38] sm:$0xf]
    %v2316 = vld [vmem:[#allocation13 + $0x3c] sm:$0xf]
    %s2317 = scalar_lea.vmem [#allocation13], 64
    %v2318 = vld [vmem:[%s2317] sm:$0xf]
    %v2319 = vld [vmem:[%s2317 + $0x4] sm:$0xf]
    %v2320 = vld [vmem:[%s2317 + $0x8] sm:$0xf]
    %v2321 = vld [vmem:[%s2317 + $0xc] sm:$0xf]
    %v2322 = vld [vmem:[%s2317 + $0x10] sm:$0xf]
    %v2323 = vld [vmem:[%s2317 + $0x14] sm:$0xf]
    %v2324 = vld [vmem:[%s2317 + $0x18] sm:$0xf]
    %v2325 = vld [vmem:[%s2317 + $0x1c] sm:$0xf]
    %v2326 = vld [vmem:[%s2317 + $0x20] sm:$0xf]
    %v2327 = vld [vmem:[%s2317 + $0x24] sm:$0xf]
    %v2328 = vld [vmem:[%s2317 + $0x28] sm:$0xf]
    %v2329 = vld [vmem:[%s2317 + $0x2c] sm:$0xf]
    %v2330 = vld [vmem:[%s2317 + $0x30] sm:$0xf]
    %v2331 = vld [vmem:[%s2317 + $0x34] sm:$0xf]
    %v2332 = vld [vmem:[%s2317 + $0x38] sm:$0xf]
    %v2333 = vld [vmem:[%s2317 + $0x3c] sm:$0xf]
    %v2342 = vunpack.c.l.b16 %v2293
    %v2343 = vunpack.c.l.b16 %v2294
    %v2344 = vunpack.c.l.b16 %v2295
    %v2345 = vunpack.c.l.b16 %v2296
    %v2346 = vunpack.c.l.b16 %v2297
    %v2347 = vunpack.c.l.b16 %v2298
    %v2348 = vunpack.c.l.b16 %v2299
    %v2349 = vunpack.c.l.b16 %v2300
    %v2350 = vrot.slane %v2342, 1
    %vm2351 = vcmask 1041409
    %v2352 = vsel %vm2351, %v2343, %v2350
    %v2353 = vrot.slane %v2344, 7
    %vm2354 = vcmask 1042434
    %v2355 = vsel %vm2354, %v2353, %v2352
    %v2356 = vrot.slane %v2345, 6
    %vm2357 = vcmask 1043459
    %v2358 = vsel %vm2357, %v2356, %v2355
    %v2359 = vrot.slane %v2346, 5
    %vm2360 = vcmask 1044484
    %v2361 = vsel %vm2360, %v2359, %v2358
    %v2362 = vrot.slane %v2347, 4
    %vm2363 = vcmask 1045509
    %v2364 = vsel %vm2363, %v2362, %v2361
    %v2365 = vrot.slane %v2348, 3
    %vm2366 = vcmask 1046534
    %v2367 = vsel %vm2366, %v2365, %v2364
    %v2368 = vrot.slane %v2349, 2
    %vm2369 = vcmask 1047559
    %v2370 = vsel %vm2369, %v2368, %v2367
    %v2371 = vpack.c.b16 %v2370, %v2370
    %v2389 = vunpack.c.l.b16 %v2318
    %v2390 = vunpack.c.l.b16 %v2319
    %v2391 = vunpack.c.l.b16 %v2320
    %v2392 = vunpack.c.l.b16 %v2321
    %v2393 = vunpack.c.l.b16 %v2322
    %v2394 = vunpack.c.l.b16 %v2323
    %v2395 = vunpack.c.l.b16 %v2324
    %v2396 = vunpack.c.l.b16 %v2325
    %v2397 = vunpack.c.l.b16 %v2326
    %v2398 = vunpack.c.l.b16 %v2327
    %v2399 = vunpack.c.l.b16 %v2328
    %v2400 = vunpack.c.l.b16 %v2329
    %v2401 = vunpack.c.l.b16 %v2330
    %v2402 = vunpack.c.l.b16 %v2331
    %v2403 = vunpack.c.l.b16 %v2332
    %v2404 = vunpack.c.l.b16 %v2333
    %v2405 = vpack.c.b16 %v2390, %v2389
    %v2406 = vpack.c.b16 %v2392, %v2391
    %v2407 = vpack.c.b16 %v2394, %v2393
    %v2408 = vpack.c.b16 %v2396, %v2395
    %v2409 = vpack.c.b16 %v2398, %v2397
    %v2410 = vpack.c.b16 %v2400, %v2399
    %v2411 = vpack.c.b16 %v2402, %v2401
    %v2412 = vpack.c.b16 %v2404, %v2403
    %2421 = vmatprep.subr.bf16.mxu0 0
    %2422 = vmatpush1.bf16.msra.mxu0 %v2412
    %2423 = vmatprep.subr.bf16.mxu0 0
    %2424 = vmatpush1.bf16.msra.mxu0 %v2411
    %2425 = vmatprep.subr.bf16.mxu0 0
    %2426 = vmatpush1.bf16.msra.mxu0 %v2410
    %2427 = vmatprep.subr.bf16.mxu0 0
    %2428 = vmatpush1.bf16.msra.mxu0 %v2409
    %2429 = vmatprep.subr.bf16.mxu0 0
    %2430 = vmatpush1.bf16.msra.mxu0 %v2408
    %2431 = vmatprep.subr.bf16.mxu0 0
    %2432 = vmatpush1.bf16.msra.mxu0 %v2407
    %2433 = vmatprep.subr.bf16.mxu0 0
    %2434 = vmatpush1.bf16.msra.mxu0 %v2406
    %2435 = vmatprep.subr.bf16.mxu0 0
    %2436 = vmatpush1.bf16.msra.mxu0 %v2405
    %2437 = vmatprep.subr.bf16.mxu0 0
    %2438 = vmatpush2.bf16.msra.mxu0 0
    %2439 = vmatprep.subr.bf16.mxu0 0
    %2440 = vmatpush2.bf16.msra.mxu0 0
    %2441 = vmatprep.subr.bf16.mxu0 0
    %2442 = vmatpush2.bf16.msra.mxu0 0
    %2443 = vmatprep.subr.bf16.mxu0 0
    %2444 = vmatpush2.bf16.msra.mxu0 0
    %2445 = vmatprep.subr.bf16.mxu0 0
    %2446 = vmatpush2.bf16.msra.mxu0 0
    %2447 = vmatprep.subr.bf16.mxu0 0
    %2448 = vmatpush2.bf16.msra.mxu0 0
    %2449 = vmatprep.subr.bf16.mxu0 0
    %2450 = vmatpush2.bf16.msra.mxu0 0
    %2451 = vmatprep.subr.bf16.mxu0 0
    %2452 = vmatpush2.bf16.msra.mxu0 0
    %2453 = vmatprep.mubr.bf16.mxu0 0
    %2454 = vmatmul.mubr.bf16.gmra.mxu0 %v2371
    %v2455 = vpop.f32.mrf.mxu0
    %v2456 = vadd.f32 0.0, %v2455
    %v2457 = vpop.f32.mrf.mxu0
    %v2458 = vpop.f32.mrf.mxu0
    %v2459 = vpop.f32.mrf.mxu0
    %2460 = vdwg.mxu0
    %v2461 = vrot.slane %v2343, 7
    %v2462 = vsel %vm2351, %v2461, %v2342
    %v2463 = vrot.slane %v2344, 6
    %v2464 = vsel %vm2354, %v2463, %v2462
    %v2465 = vrot.slane %v2345, 5
    %v2466 = vsel %vm2357, %v2465, %v2464
    %v2467 = vrot.slane %v2346, 4
    %v2468 = vsel %vm2360, %v2467, %v2466
    %v2469 = vrot.slane %v2347, 3
    %v2470 = vsel %vm2363, %v2469, %v2468
    %v2471 = vrot.slane %v2348, 2
    %v2472 = vsel %vm2366, %v2471, %v2470
    %v2473 = vrot.slane %v2349, 1
    %v2474 = vsel %vm2369, %v2473, %v2472
    %v2475 = vpack.c.b16 %v2474, %v2474
    %v2493 = vunpack.c.l.b16 %v2301
    %v2494 = vunpack.c.l.b16 %v2302
    %v2495 = vunpack.c.l.b16 %v2303
    %v2496 = vunpack.c.l.b16 %v2304
    %v2497 = vunpack.c.l.b16 %v2305
    %v2498 = vunpack.c.l.b16 %v2306
    %v2499 = vunpack.c.l.b16 %v2307
    %v2500 = vunpack.c.l.b16 %v2308
    %v2501 = vunpack.c.l.b16 %v2309
    %v2502 = vunpack.c.l.b16 %v2310
    %v2503 = vunpack.c.l.b16 %v2311
    %v2504 = vunpack.c.l.b16 %v2312
    %v2505 = vunpack.c.l.b16 %v2313
    %v2506 = vunpack.c.l.b16 %v2314
    %v2507 = vunpack.c.l.b16 %v2315
    %v2508 = vunpack.c.l.b16 %v2316
    %v2509 = vpack.c.b16 %v2494, %v2493
    %v2510 = vpack.c.b16 %v2496, %v2495
    %v2511 = vpack.c.b16 %v2498, %v2497
    %v2512 = vpack.c.b16 %v2500, %v2499
    %v2513 = vpack.c.b16 %v2502, %v2501
    %v2514 = vpack.c.b16 %v2504, %v2503
    %v2515 = vpack.c.b16 %v2506, %v2505
    %v2516 = vpack.c.b16 %v2508, %v2507
    %2525 = vmatprep.subr.bf16.mxu0 0
    %2526 = vmatpush1.bf16.msra.mxu0 %v2516
    %2527 = vmatprep.subr.bf16.mxu0 0
    %2528 = vmatpush1.bf16.msra.mxu0 %v2515
    %2529 = vmatprep.subr.bf16.mxu0 0
    %2530 = vmatpush1.bf16.msra.mxu0 %v2514
    %2531 = vmatprep.subr.bf16.mxu0 0
    %2532 = vmatpush1.bf16.msra.mxu0 %v2513
    %2533 = vmatprep.subr.bf16.mxu0 0
    %2534 = vmatpush1.bf16.msra.mxu0 %v2512
    %2535 = vmatprep.subr.bf16.mxu0 0
    %2536 = vmatpush1.bf16.msra.mxu0 %v2511
    %2537 = vmatprep.subr.bf16.mxu0 0
    %2538 = vmatpush1.bf16.msra.mxu0 %v2510
    %2539 = vmatprep.subr.bf16.mxu0 0
    %2540 = vmatpush1.bf16.msra.mxu0 %v2509
    %2541 = vmatprep.subr.bf16.mxu0 0
    %2542 = vmatpush2.bf16.msra.mxu0 0
    %2543 = vmatprep.subr.bf16.mxu0 0
    %2544 = vmatpush2.bf16.msra.mxu0 0
    %2545 = vmatprep.subr.bf16.mxu0 0
    %2546 = vmatpush2.bf16.msra.mxu0 0
    %2547 = vmatprep.subr.bf16.mxu0 0
    %2548 = vmatpush2.bf16.msra.mxu0 0
    %2549 = vmatprep.subr.bf16.mxu0 0
    %2550 = vmatpush2.bf16.msra.mxu0 0
    %2551 = vmatprep.subr.bf16.mxu0 0
    %2552 = vmatpush2.bf16.msra.mxu0 0
    %2553 = vmatprep.subr.bf16.mxu0 0
    %2554 = vmatpush2.bf16.msra.mxu0 0
    %2555 = vmatprep.subr.bf16.mxu0 0
    %2556 = vmatpush2.bf16.msra.mxu0 0
    %2557 = vmatprep.mubr.bf16.mxu0 0
    %2558 = vmatmul.mubr.bf16.gmra.mxu0 %v2475
    %v2559 = vpop.f32.mrf.mxu0
    %v2560 = vadd.f32 %v2456, %v2559
    %v2561 = vpop.f32.mrf.mxu0
    %v2562 = vpop.f32.mrf.mxu0
    %v2563 = vpop.f32.mrf.mxu0
    %2564 = vdwg.mxu0
    %s2565 = scalar_lea.vmem [#allocation13], 128
    %v2566 = vld [vmem:[%s2565] sm:$0xf]
    %v2567 = vld [vmem:[%s2565 + $0x4] sm:$0xf]
    %v2568 = vld [vmem:[%s2565 + $0x8] sm:$0xf]
    %v2569 = vld [vmem:[%s2565 + $0xc] sm:$0xf]
    %v2570 = vld [vmem:[%s2565 + $0x10] sm:$0xf]
    %v2571 = vld [vmem:[%s2565 + $0x14] sm:$0xf]
    %v2572 = vld [vmem:[%s2565 + $0x18] sm:$0xf]
    %v2573 = vld [vmem:[%s2565 + $0x1c] sm:$0xf]
    %v2574 = vld [vmem:[%s2565 + $0x20] sm:$0xf]
    %v2575 = vld [vmem:[%s2565 + $0x24] sm:$0xf]
    %v2576 = vld [vmem:[%s2565 + $0x28] sm:$0xf]
    %v2577 = vld [vmem:[%s2565 + $0x2c] sm:$0xf]
    %v2578 = vld [vmem:[%s2565 + $0x30] sm:$0xf]
    %v2579 = vld [vmem:[%s2565 + $0x34] sm:$0xf]
    %v2580 = vld [vmem:[%s2565 + $0x38] sm:$0xf]
    %v2581 = vld [vmem:[%s2565 + $0x3c] sm:$0xf]
    %v2582 = vrot.slane %v2342, 2
    %v2583 = vrot.slane %v2343, 1
    %v2584 = vsel %vm2351, %v2583, %v2582
    %v2585 = vsel %vm2354, %v2344, %v2584
    %v2586 = vrot.slane %v2345, 7
    %v2587 = vsel %vm2357, %v2586, %v2585
    %v2588 = vrot.slane %v2346, 6
    %v2589 = vsel %vm2360, %v2588, %v2587
    %v2590 = vrot.slane %v2347, 5
    %v2591 = vsel %vm2363, %v2590, %v2589
    %v2592 = vrot.slane %v2348, 4
    %v2593 = vsel %vm2366, %v2592, %v2591
    %v2594 = vrot.slane %v2349, 3
    %v2595 = vsel %vm2369, %v2594, %v2593
    %v2596 = vpack.c.b16 %v2595, %v2595
    %v2614 = vunpack.c.l.b16 %v2566
    %v2615 = vunpack.c.l.b16 %v2567
    %v2616 = vunpack.c.l.b16 %v2568
    %v2617 = vunpack.c.l.b16 %v2569
    %v2618 = vunpack.c.l.b16 %v2570
    %v2619 = vunpack.c.l.b16 %v2571
    %v2620 = vunpack.c.l.b16 %v2572
    %v2621 = vunpack.c.l.b16 %v2573
    %v2622 = vunpack.c.l.b16 %v2574
    %v2623 = vunpack.c.l.b16 %v2575
    %v2624 = vunpack.c.l.b16 %v2576
    %v2625 = vunpack.c.l.b16 %v2577
    %v2626 = vunpack.c.l.b16 %v2578
    %v2627 = vunpack.c.l.b16 %v2579
    %v2628 = vunpack.c.l.b16 %v2580
    %v2629 = vunpack.c.l.b16 %v2581
    %v2630 = vpack.c.b16 %v2615, %v2614
    %v2631 = vpack.c.b16 %v2617, %v2616
    %v2632 = vpack.c.b16 %v2619, %v2618
    %v2633 = vpack.c.b16 %v2621, %v2620
    %v2634 = vpack.c.b16 %v2623, %v2622
    %v2635 = vpack.c.b16 %v2625, %v2624
    %v2636 = vpack.c.b16 %v2627, %v2626
    %v2637 = vpack.c.b16 %v2629, %v2628
    %2646 = vmatprep.subr.bf16.mxu0 0
    %2647 = vmatpush1.bf16.msra.mxu0 %v2637
    %2648 = vmatprep.subr.bf16.mxu0 0
    %2649 = vmatpush1.bf16.msra.mxu0 %v2636
    %2650 = vmatprep.subr.bf16.mxu0 0
    %2651 = vmatpush1.bf16.msra.mxu0 %v2635
    %2652 = vmatprep.subr.bf16.mxu0 0
    %2653 = vmatpush1.bf16.msra.mxu0 %v2634
    %2654 = vmatprep.subr.bf16.mxu0 0
    %2655 = vmatpush1.bf16.msra.mxu0 %v2633
    %2656 = vmatprep.subr.bf16.mxu0 0
    %2657 = vmatpush1.bf16.msra.mxu0 %v2632
    %2658 = vmatprep.subr.bf16.mxu0 0
    %2659 = vmatpush1.bf16.msra.mxu0 %v2631
    %2660 = vmatprep.subr.bf16.mxu0 0
    %2661 = vmatpush1.bf16.msra.mxu0 %v2630
    %2662 = vmatprep.subr.bf16.mxu0 0
    %2663 = vmatpush2.bf16.msra.mxu0 0
    %2664 = vmatprep.subr.bf16.mxu0 0
    %2665 = vmatpush2.bf16.msra.mxu0 0
    %2666 = vmatprep.subr.bf16.mxu0 0
    %2667 = vmatpush2.bf16.msra.mxu0 0
    %2668 = vmatprep.subr.bf16.mxu0 0
    %2669 = vmatpush2.bf16.msra.mxu0 0
    %2670 = vmatprep.subr.bf16.mxu0 0
    %2671 = vmatpush2.bf16.msra.mxu0 0
    %2672 = vmatprep.subr.bf16.mxu0 0
    %2673 = vmatpush2.bf16.msra.mxu0 0
    %2674 = vmatprep.subr.bf16.mxu0 0
    %2675 = vmatpush2.bf16.msra.mxu0 0
    %2676 = vmatprep.subr.bf16.mxu0 0
    %2677 = vmatpush2.bf16.msra.mxu0 0
    %2678 = vmatprep.mubr.bf16.mxu0 0
    %2679 = vmatmul.mubr.bf16.gmra.mxu0 %v2596
    %v2680 = vpop.f32.mrf.mxu0
    %v2681 = vadd.f32 0.0, %v2680
    %v2682 = vpop.f32.mrf.mxu0
    %v2683 = vpop.f32.mrf.mxu0
    %v2684 = vpop.f32.mrf.mxu0
    %2685 = vdwg.mxu0
    %v2686 = vadd.f32 %v2560, %v2681
    %s2687 = scalar_lea.vmem [#allocation13], 192
    %v2688 = vld [vmem:[%s2687] sm:$0xf]
    %v2689 = vld [vmem:[%s2687 + $0x4] sm:$0xf]
    %v2690 = vld [vmem:[%s2687 + $0x8] sm:$0xf]
    %v2691 = vld [vmem:[%s2687 + $0xc] sm:$0xf]
    %v2692 = vld [vmem:[%s2687 + $0x10] sm:$0xf]
    %v2693 = vld [vmem:[%s2687 + $0x14] sm:$0xf]
    %v2694 = vld [vmem:[%s2687 + $0x18] sm:$0xf]
    %v2695 = vld [vmem:[%s2687 + $0x1c] sm:$0xf]
    %v2696 = vld [vmem:[%s2687 + $0x20] sm:$0xf]
    %v2697 = vld [vmem:[%s2687 + $0x24] sm:$0xf]
    %v2698 = vld [vmem:[%s2687 + $0x28] sm:$0xf]
    %v2699 = vld [vmem:[%s2687 + $0x2c] sm:$0xf]
    %v2700 = vld [vmem:[%s2687 + $0x30] sm:$0xf]
    %v2701 = vld [vmem:[%s2687 + $0x34] sm:$0xf]
    %v2702 = vld [vmem:[%s2687 + $0x38] sm:$0xf]
    %v2703 = vld [vmem:[%s2687 + $0x3c] sm:$0xf]
    %v2704 = vrot.slane %v2342, 3
    %v2705 = vrot.slane %v2343, 2
    %v2706 = vsel %vm2351, %v2705, %v2704
    %v2707 = vrot.slane %v2344, 1
    %v2708 = vsel %vm2354, %v2707, %v2706
    %v2709 = vsel %vm2357, %v2345, %v2708
    %v2710 = vrot.slane %v2346, 7
    %v2711 = vsel %vm2360, %v2710, %v2709
    %v2712 = vrot.slane %v2347, 6
    %v2713 = vsel %vm2363, %v2712, %v2711
    %v2714 = vrot.slane %v2348, 5
    %v2715 = vsel %vm2366, %v2714, %v2713
    %v2716 = vrot.slane %v2349, 4
    %v2717 = vsel %vm2369, %v2716, %v2715
    %v2718 = vpack.c.b16 %v2717, %v2717
    %v2736 = vunpack.c.l.b16 %v2688
    %v2737 = vunpack.c.l.b16 %v2689
    %v2738 = vunpack.c.l.b16 %v2690
    %v2739 = vunpack.c.l.b16 %v2691
    %v2740 = vunpack.c.l.b16 %v2692
    %v2741 = vunpack.c.l.b16 %v2693
    %v2742 = vunpack.c.l.b16 %v2694
    %v2743 = vunpack.c.l.b16 %v2695
    %v2744 = vunpack.c.l.b16 %v2696
    %v2745 = vunpack.c.l.b16 %v2697
    %v2746 = vunpack.c.l.b16 %v2698
    %v2747 = vunpack.c.l.b16 %v2699
    %v2748 = vunpack.c.l.b16 %v2700
    %v2749 = vunpack.c.l.b16 %v2701
    %v2750 = vunpack.c.l.b16 %v2702
    %v2751 = vunpack.c.l.b16 %v2703
    %v2752 = vpack.c.b16 %v2737, %v2736
    %v2753 = vpack.c.b16 %v2739, %v2738
    %v2754 = vpack.c.b16 %v2741, %v2740
    %v2755 = vpack.c.b16 %v2743, %v2742
    %v2756 = vpack.c.b16 %v2745, %v2744
    %v2757 = vpack.c.b16 %v2747, %v2746
    %v2758 = vpack.c.b16 %v2749, %v2748
    %v2759 = vpack.c.b16 %v2751, %v2750
    %2768 = vmatprep.subr.bf16.mxu0 0
    %2769 = vmatpush1.bf16.msra.mxu0 %v2759
    %2770 = vmatprep.subr.bf16.mxu0 0
    %2771 = vmatpush1.bf16.msra.mxu0 %v2758
    %2772 = vmatprep.subr.bf16.mxu0 0
    %2773 = vmatpush1.bf16.msra.mxu0 %v2757
    %2774 = vmatprep.subr.bf16.mxu0 0
    %2775 = vmatpush1.bf16.msra.mxu0 %v2756
    %2776 = vmatprep.subr.bf16.mxu0 0
    %2777 = vmatpush1.bf16.msra.mxu0 %v2755
    %2778 = vmatprep.subr.bf16.mxu0 0
    %2779 = vmatpush1.bf16.msra.mxu0 %v2754
    %2780 = vmatprep.subr.bf16.mxu0 0
    %2781 = vmatpush1.bf16.msra.mxu0 %v2753
    %2782 = vmatprep.subr.bf16.mxu0 0
    %2783 = vmatpush1.bf16.msra.mxu0 %v2752
    %2784 = vmatprep.subr.bf16.mxu0 0
    %2785 = vmatpush2.bf16.msra.mxu0 0
    %2786 = vmatprep.subr.bf16.mxu0 0
    %2787 = vmatpush2.bf16.msra.mxu0 0
    %2788 = vmatprep.subr.bf16.mxu0 0
    %2789 = vmatpush2.bf16.msra.mxu0 0
    %2790 = vmatprep.subr.bf16.mxu0 0
    %2791 = vmatpush2.bf16.msra.mxu0 0
    %2792 = vmatprep.subr.bf16.mxu0 0
    %2793 = vmatpush2.bf16.msra.mxu0 0
    %2794 = vmatprep.subr.bf16.mxu0 0
    %2795 = vmatpush2.bf16.msra.mxu0 0
    %2796 = vmatprep.subr.bf16.mxu0 0
    %2797 = vmatpush2.bf16.msra.mxu0 0
    %2798 = vmatprep.subr.bf16.mxu0 0
    %2799 = vmatpush2.bf16.msra.mxu0 0
    %2800 = vmatprep.mubr.bf16.mxu0 0
    %2801 = vmatmul.mubr.bf16.gmra.mxu0 %v2718
    %v2802 = vpop.f32.mrf.mxu0
    %v2803 = vadd.f32 0.0, %v2802
    %v2804 = vpop.f32.mrf.mxu0
    %v2805 = vpop.f32.mrf.mxu0
    %v2806 = vpop.f32.mrf.mxu0
    %2807 = vdwg.mxu0
    %v2808 = vadd.f32 %v2686, %v2803
    %v2809 = vld [vmem:[#allocation15] sm:$0x1]
    %v2811 = vlaneseq
    %v2812 = vshrl.u32 %v2811, 7
    %v2813 = vsub.s32 0, %v2812
    %v2814 = vrot.slane %v2809, %v2813
    %v2816 = vadd.f32 %v2808, %v2814
    %v2817 = vmax.f32 %v2816, 0.0
    %v2818 = vpack.c.bf16 %v2817, %v2817
    %v2819 = vld [vmem:[#allocation16] sm:$0xf]
    %v2820 = vld [vmem:[#allocation16 + $0x4] sm:$0xf]
    %v2821 = vld [vmem:[#allocation16 + $0x8] sm:$0xf]
    %v2822 = vld [vmem:[#allocation16 + $0xc] sm:$0xf]
    %v2823 = vld [vmem:[#allocation16 + $0x10] sm:$0xf]
    %v2824 = vld [vmem:[#allocation16 + $0x14] sm:$0xf]
    %v2825 = vld [vmem:[#allocation16 + $0x18] sm:$0xf]
    %v2826 = vld [vmem:[#allocation16 + $0x1c] sm:$0xf]
    %v2827 = vld [vmem:[#allocation16 + $0x20] sm:$0xf]
    %v2828 = vld [vmem:[#allocation16 + $0x24] sm:$0xf]
    %v2829 = vld [vmem:[#allocation16 + $0x28] sm:$0xf]
    %v2830 = vld [vmem:[#allocation16 + $0x2c] sm:$0xf]
    %v2831 = vld [vmem:[#allocation16 + $0x30] sm:$0xf]
    %v2832 = vld [vmem:[#allocation16 + $0x34] sm:$0xf]
    %v2833 = vld [vmem:[#allocation16 + $0x38] sm:$0xf]
    %v2834 = vld [vmem:[#allocation16 + $0x3c] sm:$0xf]
    %v2835 = vld [vmem:[#allocation18] sm:$0x1]
    %v2837 = vlaneseq
    %v2838 = vshrl.u32 %v2837, 7
    %v2839 = vsub.s32 0, %v2838
    %v2840 = vrot.slane %v2835, %v2839
    %v2858 = vunpack.c.l.b16 %v2819
    %v2859 = vunpack.c.l.b16 %v2820
    %v2860 = vunpack.c.l.b16 %v2821
    %v2861 = vunpack.c.l.b16 %v2822
    %v2862 = vunpack.c.l.b16 %v2823
    %v2863 = vunpack.c.l.b16 %v2824
    %v2864 = vunpack.c.l.b16 %v2825
    %v2865 = vunpack.c.l.b16 %v2826
    %v2866 = vunpack.c.l.b16 %v2827
    %v2867 = vunpack.c.l.b16 %v2828
    %v2868 = vunpack.c.l.b16 %v2829
    %v2869 = vunpack.c.l.b16 %v2830
    %v2870 = vunpack.c.l.b16 %v2831
    %v2871 = vunpack.c.l.b16 %v2832
    %v2872 = vunpack.c.l.b16 %v2833
    %v2873 = vunpack.c.l.b16 %v2834
    %v2874 = vpack.c.b16 %v2859, %v2858
    %v2875 = vpack.c.b16 %v2861, %v2860
    %v2876 = vpack.c.b16 %v2863, %v2862
    %v2877 = vpack.c.b16 %v2865, %v2864
    %v2878 = vpack.c.b16 %v2867, %v2866
    %v2879 = vpack.c.b16 %v2869, %v2868
    %v2880 = vpack.c.b16 %v2871, %v2870
    %v2881 = vpack.c.b16 %v2873, %v2872
    %2890 = vmatprep.subr.bf16.mxu0 0
    %2891 = vmatpush1.bf16.msra.mxu0 %v2881
    %2892 = vmatprep.subr.bf16.mxu0 0
    %2893 = vmatpush1.bf16.msra.mxu0 %v2880
    %2894 = vmatprep.subr.bf16.mxu0 0
    %2895 = vmatpush1.bf16.msra.mxu0 %v2879
    %2896 = vmatprep.subr.bf16.mxu0 0
    %2897 = vmatpush1.bf16.msra.mxu0 %v2878
    %2898 = vmatprep.subr.bf16.mxu0 0
    %2899 = vmatpush1.bf16.msra.mxu0 %v2877
    %2900 = vmatprep.subr.bf16.mxu0 0
    %2901 = vmatpush1.bf16.msra.mxu0 %v2876
    %2902 = vmatprep.subr.bf16.mxu0 0
    %2903 = vmatpush1.bf16.msra.mxu0 %v2875
    %2904 = vmatprep.subr.bf16.mxu0 0
    %2905 = vmatpush1.bf16.msra.mxu0 %v2874
    %2906 = vmatprep.subr.bf16.mxu0 0
    %2907 = vmatpush2.bf16.msra.mxu0 0
    %2908 = vmatprep.subr.bf16.mxu0 0
    %2909 = vmatpush2.bf16.msra.mxu0 0
    %2910 = vmatprep.subr.bf16.mxu0 0
    %2911 = vmatpush2.bf16.msra.mxu0 0
    %2912 = vmatprep.subr.bf16.mxu0 0
    %2913 = vmatpush2.bf16.msra.mxu0 0
    %2914 = vmatprep.subr.bf16.mxu0 0
    %2915 = vmatpush2.bf16.msra.mxu0 0
    %2916 = vmatprep.subr.bf16.mxu0 0
    %2917 = vmatpush2.bf16.msra.mxu0 0
    %2918 = vmatprep.subr.bf16.mxu0 0
    %2919 = vmatpush2.bf16.msra.mxu0 0
    %2920 = vmatprep.subr.bf16.mxu0 0
    %2921 = vmatpush2.bf16.msra.mxu0 0
    %2922 = vmatprep.mubr.bf16.mxu0 0
    %2923 = vmatmul.mubr.bf16.gmra.mxu0 %v2818
    %v2924 = vpop.f32.mrf.mxu0
    %v2925 = vadd.f32 %v2840, %v2924
    %v2926 = vpop.f32.mrf.mxu0
    %v2927 = vpop.f32.mrf.mxu0
    %v2928 = vpop.f32.mrf.mxu0
    %2929 = vdwg.mxu0
    %2930 = vmax.xlane.f32.xlu0 %v2925
    %v2931 = vpop.xlane.xlu0 %2930
    %v2932 = vsub.f32 %v2925, %v2931
    %v2933 = vmul.f32 %v2932, 1.442695
    %v2934 = vpow.pop %v2933
    %2935 = vadd.xlane.f32.xlu0 %v2934
    %v2936 = vpop.xlane.xlu0 %2935
    %v2937 = vlog2.pop %v2936
    %v2938 = vmul.f32 %v2937, 0.6931472
    %v2939 = vsub.f32 %v2932, %v2938
    %2940 = vst [vmem:[#allocation19] sm:$0xff] %v2939
    // Predicated region
    $region74: #{net_forward.1} parent=1 // pred_check
      _
    $region75: #{net_forward.1} parent=1 // pred_check_branch
      %2942 = sbr.rel (0) target = $region77
    $region76: #{net_forward.1} parent=1 // pred_region
      %s2944 = ssub.s32 128, 128
      %2945 = vsyncadd [#allocation6], %s2944
      %s2947 = sshll.u32 [#allocation19], 4
      %s2948 = int_to_ptr.vmem [resolvable:$true] %s2947
      %2950 = dma.vmem_to_hbm [thread:$0]  %s2948, 128, %s9, [#allocation6]
    $region77: #{net_forward.1} parent=1 // pred_fallthru
      _
    // Predicated region
    $region78: #{net_forward.1} parent=1 // pred_check
      _
    $region79: #{net_forward.1} parent=1 // pred_check_branch
      %2952 = sbr.rel (0) target = $region81
    $region80: #{net_forward.1} parent=1 // pred_region
      %2953 = dma.done [#allocation6], 128
    $region81: #{net_forward.1} parent=1 // pred_fallthru
      _
    %2954 = vsyncpa [#allocation5], 1
    %2955 = vsyncpa [#allocation8], 1
    %2956 = vsyncpa [#allocation11], 1
    %2957 = vsyncpa [#allocation14], 1
    %2958 = vsyncpa [#allocation17], 1
    %2959 = vsyncpa [#allocation6], 1

</llo_original>
